<compile_context>
chip_gen: v7x
topology: tpu7x:2x2x1
jax: 0.10.0
libtpu: 0.0.40
codegen_flags: <defaults>
</compile_context>

<pallas_src>
import jax
import jax.numpy as jnp
from jax.experimental import pallas as pl
from jax.experimental.pallas import tpu as pltpu


def _elu(x):
    # ELU(alpha=1): x if x>0 else exp(x)-1   (exp arg clamped for safety)
    return jnp.where(x > 0, x, jnp.exp(jnp.minimum(x, 0.0)) - 1.0)


def _conv_lengths(L, strides, ksize=3):
    louts = []
    lin = L
    for s in strides:
        lo = (lin - ksize) // s + 1
        louts.append(lo)
        lin = lo
    return tuple(louts)


def _make_kernel(louts, strides):
    """Kernel for one block of BT lane-packed samples.

    Activations are time-major / lane-packed: (time, BT*C).  Each Conv1d is a
    single im2col matmul: taps concatenated along lanes, block-diagonal weight
    taps stacked along the contraction dim.
    """

    def kernel(x_ref, w1_ref, b1_ref, w2_ref, b2_ref, w3_ref, b3_ref,
               w4_ref, b4_ref, f1w_ref, f1b_ref, f2w_ref, f2b_ref,
               out_ref, buf_ref):
        # ---- conv 1 (stride 1): taps sliced straight from the input block ----
        x = x_ref[0]                                        # (L, BT*E) f32
        l1 = louts[0]
        x_cat = jnp.concatenate([x[k:k + l1, :] for k in range(3)], axis=-1)
        h = _elu(jnp.dot(x_cat, w1_ref[...],
                         preferred_element_type=jnp.float32) + b1_ref[...])
        buf_ref[0:l1, :] = h                                # stash for layer 2

        # ---- conv 2..4: taps read (strided for stride=2) from VMEM scratch ----
        for li, (w_ref, b_ref) in enumerate(
                ((w2_ref, b2_ref), (w3_ref, b3_ref), (w4_ref, b4_ref)),
                start=1):
            s, lo = strides[li], louts[li]
            taps = [buf_ref[pl.ds(k, lo, s) if s > 1 else pl.ds(k, lo), :]
                    for k in range(3)]
            x_cat = jnp.concatenate(taps, axis=-1)          # (lo, 3*BT*C)
            h = _elu(jnp.dot(x_cat, w_ref[...],
                             preferred_element_type=jnp.float32) + b_ref[...])
            if li < 3:                                      # last layer: no store
                buf_ref[0:lo, :] = h

        # ---- avg_pool1d over the full remaining length ----
        feat = jnp.mean(h, axis=0, keepdims=True)           # (1, BT*C)
        # TODO(synk): F.dropout(p=dropout_p) -- dropout_p=0.0 here so it is the
        # identity; a nonzero p would need pltpu.prng_* to build a lane mask.
        z = jnp.maximum(
            jnp.dot(feat, f1w_ref[...], preferred_element_type=jnp.float32)
            + f1b_ref[...], 0.0)                            # ReLU, (1, BT*H)
        logits = jnp.dot(z, f2w_ref[...],
                         preferred_element_type=jnp.float32) + f2b_ref[...]
        out_ref[0] = logits                                 # (1, BT*K)

    return kernel


def news_classifier_forward(tokens, params, apply_softmax=False,
                            block_samples=None):
    (emb, w1, b1, w2, b2, w3, b3, w4, b4, fc1w, fc1b, fc2w, fc2b) = params
    B, L = tokens.shape
    E = emb.shape[1]
    C = w1.shape[2]
    K = fc2w.shape[1]
    strides = (1, 2, 2, 1)
    louts = _conv_lengths(L, strides)
    assert louts[-1] >= 1, "sequence too short for the conv stack"

    # --- batch blocking: BT samples packed along the lane axis per grid step ---
    if block_samples is None:
        block_samples = max(1, 128 // max(E, C))
    BT = block_samples
    B_pad = -(-B // BT) * BT
    nb = B_pad // BT

    tok = tokens if B_pad == B else jnp.pad(tokens, ((0, B_pad - B), (0, 0)))
    # Embedding lookup = gather (glue, plain JAX), then pack BT samples -> lanes.
    x_emb = jnp.take(emb, tok, axis=0).astype(jnp.float32)      # (B_pad, L, E)
    x_pk = (x_emb.reshape(nb, BT, L, E)
                 .transpose(0, 2, 1, 3)
                 .reshape(nb, L, BT * E))                        # (nb, L, BT*E)

    # --- block-diagonal (lane-packed) + im2col-fused weights, built on host ---
    eye = jnp.eye(BT, dtype=jnp.float32)

    def conv_w(w):   # (3, Cin, Cout) -> (3*BT*Cin, BT*Cout), taps stacked on K
        return jnp.concatenate(
            [jnp.kron(eye, w[k].astype(jnp.float32)) for k in range(3)], axis=0)

    def tile_b(b):   # (1, C) -> (1, BT*C)
        return jnp.tile(b.astype(jnp.float32), (1, BT))

    w1c, w2c, w3c, w4c = conv_w(w1), conv_w(w2), conv_w(w3), conv_w(w4)
    b1t, b2t, b3t, b4t = tile_b(b1), tile_b(b2), tile_b(b3), tile_b(b4)
    f1w = jnp.kron(eye, fc1w.astype(jnp.float32))                # (BT*C, BT*H)
    f2w = jnp.kron(eye, fc2w.astype(jnp.float32))                # (BT*H, BT*K)
    f1b, f2b = tile_b(fc1b), tile_b(fc2b)

    def full(a):     # whole array resident in VMEM, same block every step
        return pl.BlockSpec(a.shape, lambda g, _nd=a.ndim: (0,) * _nd)

    out = pl.pallas_call(
        _make_kernel(louts, strides),
        out_shape=jax.ShapeDtypeStruct((nb, 1, BT * K), jnp.float32),
        grid=(nb,),
        in_specs=[pl.BlockSpec((1, L, BT * E), lambda g: (g, 0, 0)),
                  full(w1c), full(b1t), full(w2c), full(b2t),
                  full(w3c), full(b3t), full(w4c), full(b4t),
                  full(f1w), full(f1b), full(f2w), full(f2b)],
        out_specs=pl.BlockSpec((1, 1, BT * K), lambda g: (g, 0, 0)),
        scratch_shapes=[pltpu.VMEM((louts[0], BT * C), jnp.float32)],
        compiler_params=pltpu.CompilerParams(
            dimension_semantics=("parallel",)),
    )(x_pk, w1c, b1t, w2c, b2t, w3c, b3t, w4c, b4t, f1w, f1b, f2w, f2b)

    logits = out.reshape(B_pad, K)[:B]                           # unpack lanes
    if apply_softmax:
        logits = jax.nn.softmax(logits, axis=-1)
    return logits


def reference_forward(tokens, params, apply_softmax=False):
    """Pure-JAX reference matching the PyTorch forward (eval / p=0 dropout)."""
    (emb, w1, b1, w2, b2, w3, b3, w4, b4, fc1w, fc1b, fc2w, fc2b) = params
    h = jnp.take(emb, tokens, axis=0).astype(jnp.float32)       # (B, L, E)
    hp = jax.lax.Precision.HIGHEST
    for w, b, s in ((w1, b1, 1), (w2, b2, 2), (w3, b3, 2), (w4, b4, 1)):
        lin = h.shape[1]
        lout = (lin - 3) // s + 1
        acc = 0.0
        for k in range(3):
            xs = h[:, k:k + s * (lout - 1) + 1:s, :]
            acc = acc + jnp.einsum("blc,cd->bld", xs, w[k], precision=hp)
        y = acc + b[None]
        h = jnp.where(y > 0, y, jnp.exp(jnp.minimum(y, 0.0)) - 1.0)
    feat = h.mean(axis=1)                                       # (B, C)
    z = jnp.maximum(jnp.dot(feat, fc1w, precision=hp) + fc1b, 0.0)
    logits = jnp.dot(z, fc2w, precision=hp) + fc2b
    if apply_softmax:
        logits = jax.nn.softmax(logits, axis=-1)
    return logits


if __name__ == "__main__":
    # Small, conv-stack-consistent shapes:
    V, E, C, H, K = 100, 16, 16, 32, 4      # vocab, emb, channels, hidden, classes
    B, L = 12, 32                           # seq 32 -> conv lengths 30,14,6,4
    # B=12 -> padded to 16 = 2 lane-packed blocks of 8 samples (2 grid steps).
    dropout_p = 0.0                         # identity dropout (deterministic)

    key = jax.random.PRNGKey(0)
    ks = jax.random.split(key, 16)
    emb = jax.random.normal(ks[0], (V, E), jnp.float32) * 0.1
    emb = emb.at[0].set(0.0)                # padding_idx=0 row, as in nn.Embedding
    w1 = jax.random.normal(ks[1], (3, E, C), jnp.float32) * 0.1
    b1 = jax.random.normal(ks[2], (1, C), jnp.float32) * 0.1
    w2 = jax.random.normal(ks[3], (3, C, C), jnp.float32) * 0.1
    b2 = jax.random.normal(ks[4], (1, C), jnp.float32) * 0.1
    w3 = jax.random.normal(ks[5], (3, C, C), jnp.float32) * 0.1
    b3 = jax.random.normal(ks[6], (1, C), jnp.float32) * 0.1
    w4 = jax.random.normal(ks[7], (3, C, C), jnp.float32) * 0.1
    b4 = jax.random.normal(ks[8], (1, C), jnp.float32) * 0.1
    fc1w = jax.random.normal(ks[9], (C, H), jnp.float32) * 0.1
    fc1b = jax.random.normal(ks[10], (1, H), jnp.float32) * 0.1
    fc2w = jax.random.normal(ks[11], (H, K), jnp.float32) * 0.1
    fc2b = jax.random.normal(ks[12], (1, K), jnp.float32) * 0.1
    params = (emb, w1, b1, w2, b2, w3, b3, w4, b4, fc1w, fc1b, fc2w, fc2b)

    tokens = jax.random.randint(ks[13], (B, L), 0, V, dtype=jnp.int32)

    out = jax.block_until_ready(news_classifier_forward(tokens, params))
    ref = jax.block_until_ready(reference_forward(tokens, params))

    assert out.shape == (B, K), out.shape
    assert jnp.allclose(out, ref, atol=1e-3, rtol=1e-3), (out, ref)
    print("KERNEL_OK")
</pallas_src>

<mosaic_0001>
module attributes {stable_mosaic.version = 11 : i64} {
  func.func @kernel(%arg0: i32, %arg1: memref<1x32x128xf32, #tpu.memory_space<vmem>>, %arg2: memref<384x128xf32, #tpu.memory_space<vmem>>, %arg3: memref<1x128xf32, #tpu.memory_space<vmem>>, %arg4: memref<384x128xf32, #tpu.memory_space<vmem>>, %arg5: memref<1x128xf32, #tpu.memory_space<vmem>>, %arg6: memref<384x128xf32, #tpu.memory_space<vmem>>, %arg7: memref<1x128xf32, #tpu.memory_space<vmem>>, %arg8: memref<384x128xf32, #tpu.memory_space<vmem>>, %arg9: memref<1x128xf32, #tpu.memory_space<vmem>>, %arg10: memref<128x256xf32, #tpu.memory_space<vmem>>, %arg11: memref<1x256xf32, #tpu.memory_space<vmem>>, %arg12: memref<256x32xf32, #tpu.memory_space<vmem>>, %arg13: memref<1x32xf32, #tpu.memory_space<vmem>>, %arg14: memref<1x1x32xf32, #tpu.memory_space<vmem>>, %arg15: memref<30x128xf32, #tpu.memory_space<vmem>>) attributes {dimension_semantics = [#tpu.dimension_semantics<parallel>], iteration_bounds = array<i64: 2>, scalar_prefetch = 0 : i64, scratch_operands = 1 : i64, tpu.core_type = #tpu.core_type<tc>, window_params = [{transform_indices = @transform_0, window_bounds = array<i64: 1, 32, 128>}, {pipeline_mode = #tpu.pipeline_mode<synchronous>, transform_indices = @transform_1, window_bounds = array<i64: 384, 128>}, {pipeline_mode = #tpu.pipeline_mode<synchronous>, transform_indices = @transform_2, window_bounds = array<i64: 1, 128>}, {pipeline_mode = #tpu.pipeline_mode<synchronous>, transform_indices = @transform_3, window_bounds = array<i64: 384, 128>}, {pipeline_mode = #tpu.pipeline_mode<synchronous>, transform_indices = @transform_4, window_bounds = array<i64: 1, 128>}, {pipeline_mode = #tpu.pipeline_mode<synchronous>, transform_indices = @transform_5, window_bounds = array<i64: 384, 128>}, {pipeline_mode = #tpu.pipeline_mode<synchronous>, transform_indices = @transform_6, window_bounds = array<i64: 1, 128>}, {pipeline_mode = #tpu.pipeline_mode<synchronous>, transform_indices = @transform_7, window_bounds = array<i64: 384, 128>}, {pipeline_mode = #tpu.pipeline_mode<synchronous>, transform_indices = @transform_8, window_bounds = array<i64: 1, 128>}, {pipeline_mode = #tpu.pipeline_mode<synchronous>, transform_indices = @transform_9, window_bounds = array<i64: 128, 256>}, {pipeline_mode = #tpu.pipeline_mode<synchronous>, transform_indices = @transform_10, window_bounds = array<i64: 1, 256>}, {pipeline_mode = #tpu.pipeline_mode<synchronous>, transform_indices = @transform_11, window_bounds = array<i64: 256, 32>}, {pipeline_mode = #tpu.pipeline_mode<synchronous>, transform_indices = @transform_12, window_bounds = array<i64: 1, 32>}, {transform_indices = @transform_13, window_bounds = array<i64: 1, 1, 32>}]} {
    %c0 = arith.constant 0 : index
    %c0_0 = arith.constant 0 : index
    %c0_1 = arith.constant 0 : index
    %0 = vector.load %arg1[%c0, %c0_0, %c0_1] : memref<1x32x128xf32, #tpu.memory_space<vmem>>, vector<1x32x128xf32>
    %1 = vector.shape_cast %0 : vector<1x32x128xf32> to vector<32x128xf32>
    %2 = vector.extract_strided_slice %1 {offsets = [0, 0], sizes = [30, 128], strides = [1, 1]} : vector<32x128xf32> to vector<30x128xf32>
    %3 = vector.extract_strided_slice %1 {offsets = [1, 0], sizes = [30, 128], strides = [1, 1]} : vector<32x128xf32> to vector<30x128xf32>
    %4 = vector.extract_strided_slice %1 {offsets = [2, 0], sizes = [30, 128], strides = [1, 1]} : vector<32x128xf32> to vector<30x128xf32>
    %5 = tpu.concatenate %2, %3, %4 in 1 : vector<30x128xf32>, vector<30x128xf32>, vector<30x128xf32> -> vector<30x384xf32>
    %c0_2 = arith.constant 0 : index
    %c0_3 = arith.constant 0 : index
    %6 = vector.load %arg2[%c0_2, %c0_3] : memref<384x128xf32, #tpu.memory_space<vmem>>, vector<384x128xf32>
    %cst = arith.constant dense<0.000000e+00> : vector<30x128xf32>
    %7 = tpu.matmul %5, %6, %cst {dimension_numbers = #tpu.dot_dimension_numbers<[1], [0], [0], [1], [0, 0, 1, 1], [], []>} : vector<30x384xf32>, vector<384x128xf32>, vector<30x128xf32> -> vector<30x128xf32>
    %c0_4 = arith.constant 0 : index
    %c0_5 = arith.constant 0 : index
    %8 = vector.load %arg3[%c0_4, %c0_5] : memref<1x128xf32, #tpu.memory_space<vmem>>, vector<1x128xf32>
    %9 = vector.broadcast %8 : vector<1x128xf32> to vector<30x128xf32>
    %10 = arith.addf %7, %9 : vector<30x128xf32>
    %cst_6 = arith.constant 0.000000e+00 : f32
    %11 = vector.broadcast %cst_6 : f32 to vector<30x128xf32>
    %12 = arith.cmpf ogt, %10, %11 : vector<30x128xf32>
    %cst_7 = arith.constant 0.000000e+00 : f32
    %13 = vector.broadcast %cst_7 : f32 to vector<30x128xf32>
    %14 = arith.minimumf %10, %13 : vector<30x128xf32>
    %15 = math.exp %14 : vector<30x128xf32>
    %cst_8 = arith.constant 1.000000e+00 : f32
    %16 = vector.broadcast %cst_8 : f32 to vector<30x128xf32>
    %17 = arith.subf %15, %16 : vector<30x128xf32>
    %18 = arith.select %12, %10, %17 : vector<30x128xi1>, vector<30x128xf32>
    %c0_9 = arith.constant 0 : index
    %c0_10 = arith.constant 0 : index
    %19 = vector.load %arg15[%c0_9, %c0_10] : memref<30x128xf32, #tpu.memory_space<vmem>>, vector<30x128xf32>
    tpu.vector_store %arg15[%c0_9, %c0_10], %18 {strides = array<i32>} : memref<30x128xf32, #tpu.memory_space<vmem>>, vector<30x128xf32>,
    %c0_11 = arith.constant 0 : index
    %c0_12 = arith.constant 0 : index
    %20 = tpu.strided_load %arg15[%c0_11, %c0_12] {strides = array<i32: 2, 1>} : memref<30x128xf32, #tpu.memory_space<vmem>>, vector<14x128xf32>
    %c1 = arith.constant 1 : index
    %c0_13 = arith.constant 0 : index
    %21 = tpu.strided_load %arg15[%c1, %c0_13] {strides = array<i32: 2, 1>} : memref<30x128xf32, #tpu.memory_space<vmem>>, vector<14x128xf32>
    %c2 = arith.constant 2 : index
    %c0_14 = arith.constant 0 : index
    %22 = tpu.strided_load %arg15[%c2, %c0_14] {strides = array<i32: 2, 1>} : memref<30x128xf32, #tpu.memory_space<vmem>>, vector<14x128xf32>
    %23 = tpu.concatenate %20, %21, %22 in 1 : vector<14x128xf32>, vector<14x128xf32>, vector<14x128xf32> -> vector<14x384xf32>
    %c0_15 = arith.constant 0 : index
    %c0_16 = arith.constant 0 : index
    %24 = vector.load %arg4[%c0_15, %c0_16] : memref<384x128xf32, #tpu.memory_space<vmem>>, vector<384x128xf32>
    %cst_17 = arith.constant dense<0.000000e+00> : vector<14x128xf32>
    %25 = tpu.matmul %23, %24, %cst_17 {dimension_numbers = #tpu.dot_dimension_numbers<[1], [0], [0], [1], [0, 0, 1, 1], [], []>} : vector<14x384xf32>, vector<384x128xf32>, vector<14x128xf32> -> vector<14x128xf32>
    %c0_18 = arith.constant 0 : index
    %c0_19 = arith.constant 0 : index
    %26 = vector.load %arg5[%c0_18, %c0_19] : memref<1x128xf32, #tpu.memory_space<vmem>>, vector<1x128xf32>
    %27 = vector.broadcast %26 : vector<1x128xf32> to vector<14x128xf32>
    %28 = arith.addf %25, %27 : vector<14x128xf32>
    %cst_20 = arith.constant 0.000000e+00 : f32
    %29 = vector.broadcast %cst_20 : f32 to vector<14x128xf32>
    %30 = arith.cmpf ogt, %28, %29 : vector<14x128xf32>
    %cst_21 = arith.constant 0.000000e+00 : f32
    %31 = vector.broadcast %cst_21 : f32 to vector<14x128xf32>
    %32 = arith.minimumf %28, %31 : vector<14x128xf32>
    %33 = math.exp %32 : vector<14x128xf32>
    %cst_22 = arith.constant 1.000000e+00 : f32
    %34 = vector.broadcast %cst_22 : f32 to vector<14x128xf32>
    %35 = arith.subf %33, %34 : vector<14x128xf32>
    %36 = arith.select %30, %28, %35 : vector<14x128xi1>, vector<14x128xf32>
    %c0_23 = arith.constant 0 : index
    %c0_24 = arith.constant 0 : index
    %37 = vector.load %arg15[%c0_23, %c0_24] : memref<30x128xf32, #tpu.memory_space<vmem>>, vector<14x128xf32>
    tpu.vector_store %arg15[%c0_23, %c0_24], %36 {strides = array<i32>} : memref<30x128xf32, #tpu.memory_space<vmem>>, vector<14x128xf32>,
    %c0_25 = arith.constant 0 : index
    %c0_26 = arith.constant 0 : index
    %38 = tpu.strided_load %arg15[%c0_25, %c0_26] {strides = array<i32: 2, 1>} : memref<30x128xf32, #tpu.memory_space<vmem>>, vector<6x128xf32>
    %c1_27 = arith.constant 1 : index
    %c0_28 = arith.constant 0 : index
    %39 = tpu.strided_load %arg15[%c1_27, %c0_28] {strides = array<i32: 2, 1>} : memref<30x128xf32, #tpu.memory_space<vmem>>, vector<6x128xf32>
    %c2_29 = arith.constant 2 : index
    %c0_30 = arith.constant 0 : index
    %40 = tpu.strided_load %arg15[%c2_29, %c0_30] {strides = array<i32: 2, 1>} : memref<30x128xf32, #tpu.memory_space<vmem>>, vector<6x128xf32>
    %41 = tpu.concatenate %38, %39, %40 in 1 : vector<6x128xf32>, vector<6x128xf32>, vector<6x128xf32> -> vector<6x384xf32>
    %c0_31 = arith.constant 0 : index
    %c0_32 = arith.constant 0 : index
    %42 = vector.load %arg6[%c0_31, %c0_32] : memref<384x128xf32, #tpu.memory_space<vmem>>, vector<384x128xf32>
    %cst_33 = arith.constant dense<0.000000e+00> : vector<6x128xf32>
    %43 = tpu.matmul %41, %42, %cst_33 {dimension_numbers = #tpu.dot_dimension_numbers<[1], [0], [0], [1], [0, 0, 1, 1], [], []>} : vector<6x384xf32>, vector<384x128xf32>, vector<6x128xf32> -> vector<6x128xf32>
    %c0_34 = arith.constant 0 : index
    %c0_35 = arith.constant 0 : index
    %44 = vector.load %arg7[%c0_34, %c0_35] : memref<1x128xf32, #tpu.memory_space<vmem>>, vector<1x128xf32>
    %45 = vector.broadcast %44 : vector<1x128xf32> to vector<6x128xf32>
    %46 = arith.addf %43, %45 : vector<6x128xf32>
    %cst_36 = arith.constant 0.000000e+00 : f32
    %47 = vector.broadcast %cst_36 : f32 to vector<6x128xf32>
    %48 = arith.cmpf ogt, %46, %47 : vector<6x128xf32>
    %cst_37 = arith.constant 0.000000e+00 : f32
    %49 = vector.broadcast %cst_37 : f32 to vector<6x128xf32>
    %50 = arith.minimumf %46, %49 : vector<6x128xf32>
    %51 = math.exp %50 : vector<6x128xf32>
    %cst_38 = arith.constant 1.000000e+00 : f32
    %52 = vector.broadcast %cst_38 : f32 to vector<6x128xf32>
    %53 = arith.subf %51, %52 : vector<6x128xf32>
    %54 = arith.select %48, %46, %53 : vector<6x128xi1>, vector<6x128xf32>
    %c0_39 = arith.constant 0 : index
    %c0_40 = arith.constant 0 : index
    %55 = vector.load %arg15[%c0_39, %c0_40] : memref<30x128xf32, #tpu.memory_space<vmem>>, vector<6x128xf32>
    tpu.vector_store %arg15[%c0_39, %c0_40], %54 {strides = array<i32>} : memref<30x128xf32, #tpu.memory_space<vmem>>, vector<6x128xf32>,
    %c0_41 = arith.constant 0 : index
    %c0_42 = arith.constant 0 : index
    %56 = vector.load %arg15[%c0_41, %c0_42] : memref<30x128xf32, #tpu.memory_space<vmem>>, vector<4x128xf32>
    %c1_43 = arith.constant 1 : index
    %c0_44 = arith.constant 0 : index
    %57 = vector.load %arg15[%c1_43, %c0_44] : memref<30x128xf32, #tpu.memory_space<vmem>>, vector<4x128xf32>
    %c2_45 = arith.constant 2 : index
    %c0_46 = arith.constant 0 : index
    %58 = vector.load %arg15[%c2_45, %c0_46] : memref<30x128xf32, #tpu.memory_space<vmem>>, vector<4x128xf32>
    %59 = tpu.concatenate %56, %57, %58 in 1 : vector<4x128xf32>, vector<4x128xf32>, vector<4x128xf32> -> vector<4x384xf32>
    %c0_47 = arith.constant 0 : index
    %c0_48 = arith.constant 0 : index
    %60 = vector.load %arg8[%c0_47, %c0_48] : memref<384x128xf32, #tpu.memory_space<vmem>>, vector<384x128xf32>
    %cst_49 = arith.constant dense<0.000000e+00> : vector<4x128xf32>
    %61 = tpu.matmul %59, %60, %cst_49 {dimension_numbers = #tpu.dot_dimension_numbers<[1], [0], [0], [1], [0, 0, 1, 1], [], []>} : vector<4x384xf32>, vector<384x128xf32>, vector<4x128xf32> -> vector<4x128xf32>
    %c0_50 = arith.constant 0 : index
    %c0_51 = arith.constant 0 : index
    %62 = vector.load %arg9[%c0_50, %c0_51] : memref<1x128xf32, #tpu.memory_space<vmem>>, vector<1x128xf32>
    %63 = vector.broadcast %62 : vector<1x128xf32> to vector<4x128xf32>
    %64 = arith.addf %61, %63 : vector<4x128xf32>
    %cst_52 = arith.constant 0.000000e+00 : f32
    %65 = vector.broadcast %cst_52 : f32 to vector<4x128xf32>
    %66 = arith.cmpf ogt, %64, %65 : vector<4x128xf32>
    %cst_53 = arith.constant 0.000000e+00 : f32
    %67 = vector.broadcast %cst_53 : f32 to vector<4x128xf32>
    %68 = arith.minimumf %64, %67 : vector<4x128xf32>
    %69 = math.exp %68 : vector<4x128xf32>
    %cst_54 = arith.constant 1.000000e+00 : f32
    %70 = vector.broadcast %cst_54 : f32 to vector<4x128xf32>
    %71 = arith.subf %69, %70 : vector<4x128xf32>
    %72 = arith.select %66, %64, %71 : vector<4x128xi1>, vector<4x128xf32>
    %cst_55 = arith.constant dense<0.000000e+00> : vector<128xf32>
    %73 = vector.multi_reduction <add>, %72, %cst_55 [0] : vector<4x128xf32> to vector<128xf32>
    %74 = vector.shape_cast %73 : vector<128xf32> to vector<1x128xf32>
    %cst_56 = arith.constant 4.000000e+00 : f32
    %75 = vector.broadcast %cst_56 : f32 to vector<1x128xf32>
    %76 = arith.divf %74, %75 : vector<1x128xf32>
    %c0_57 = arith.constant 0 : index
    %c0_58 = arith.constant 0 : index
    %77 = vector.load %arg10[%c0_57, %c0_58] : memref<128x256xf32, #tpu.memory_space<vmem>>, vector<128x256xf32>
    %cst_59 = arith.constant dense<0.000000e+00> : vector<1x256xf32>
    %78 = tpu.matmul %76, %77, %cst_59 {dimension_numbers = #tpu.dot_dimension_numbers<[1], [0], [0], [1], [0, 0, 1, 1], [], []>} : vector<1x128xf32>, vector<128x256xf32>, vector<1x256xf32> -> vector<1x256xf32>
    %c0_60 = arith.constant 0 : index
    %c0_61 = arith.constant 0 : index
    %79 = vector.load %arg11[%c0_60, %c0_61] : memref<1x256xf32, #tpu.memory_space<vmem>>, vector<1x256xf32>
    %80 = arith.addf %78, %79 : vector<1x256xf32>
    %cst_62 = arith.constant 0.000000e+00 : f32
    %81 = vector.broadcast %cst_62 : f32 to vector<1x256xf32>
    %82 = arith.maximumf %80, %81 : vector<1x256xf32>
    %c0_63 = arith.constant 0 : index
    %c0_64 = arith.constant 0 : index
    %83 = vector.load %arg12[%c0_63, %c0_64] : memref<256x32xf32, #tpu.memory_space<vmem>>, vector<256x32xf32>
    %cst_65 = arith.constant dense<0.000000e+00> : vector<1x32xf32>
    %84 = tpu.matmul %82, %83, %cst_65 {dimension_numbers = #tpu.dot_dimension_numbers<[1], [0], [0], [1], [0, 0, 1, 1], [], []>} : vector<1x256xf32>, vector<256x32xf32>, vector<1x32xf32> -> vector<1x32xf32>
    %c0_66 = arith.constant 0 : index
    %c0_67 = arith.constant 0 : index
    %85 = vector.load %arg13[%c0_66, %c0_67] : memref<1x32xf32, #tpu.memory_space<vmem>>, vector<1x32xf32>
    %86 = arith.addf %84, %85 : vector<1x32xf32>
    %c0_68 = arith.constant 0 : index
    %c0_69 = arith.constant 0 : index
    %c0_70 = arith.constant 0 : index
    %87 = vector.load %arg14[%c0_68, %c0_69, %c0_70] : memref<1x1x32xf32, #tpu.memory_space<vmem>>, vector<1x1x32xf32>
    %88 = vector.shape_cast %87 : vector<1x1x32xf32> to vector<1x32xf32>
    %89 = vector.shape_cast %86 : vector<1x32xf32> to vector<1x1x32xf32>
    tpu.vector_store %arg14[%c0_68, %c0_69, %c0_70], %89 {strides = array<i32>} : memref<1x1x32xf32, #tpu.memory_space<vmem>>, vector<1x1x32xf32>,
    return
  }
  func.func @transform_0(%arg0: i32) -> (i32, i32, i32) {
    %c0_i32 = arith.constant 0 : i32
    %c0_i32_0 = arith.constant 0 : i32
    %c0_i32_1 = arith.constant 0 : i32
    return %arg0, %c0_i32, %c0_i32_0 : i32, i32, i32
  }
  func.func @transform_1(%arg0: i32) -> (i32, i32) {
    %c0_i32 = arith.constant 0 : i32
    %c0_i32_0 = arith.constant 0 : i32
    %c0_i32_1 = arith.constant 0 : i32
    return %c0_i32, %c0_i32_0 : i32, i32
  }
  func.func @transform_2(%arg0: i32) -> (i32, i32) {
    %c0_i32 = arith.constant 0 : i32
    %c0_i32_0 = arith.constant 0 : i32
    %c0_i32_1 = arith.constant 0 : i32
    return %c0_i32, %c0_i32_0 : i32, i32
  }
  func.func @transform_3(%arg0: i32) -> (i32, i32) {
    %c0_i32 = arith.constant 0 : i32
    %c0_i32_0 = arith.constant 0 : i32
    %c0_i32_1 = arith.constant 0 : i32
    return %c0_i32, %c0_i32_0 : i32, i32
  }
  func.func @transform_4(%arg0: i32) -> (i32, i32) {
    %c0_i32 = arith.constant 0 : i32
    %c0_i32_0 = arith.constant 0 : i32
    %c0_i32_1 = arith.constant 0 : i32
    return %c0_i32, %c0_i32_0 : i32, i32
  }
  func.func @transform_5(%arg0: i32) -> (i32, i32) {
    %c0_i32 = arith.constant 0 : i32
    %c0_i32_0 = arith.constant 0 : i32
    %c0_i32_1 = arith.constant 0 : i32
    return %c0_i32, %c0_i32_0 : i32, i32
  }
  func.func @transform_6(%arg0: i32) -> (i32, i32) {
    %c0_i32 = arith.constant 0 : i32
    %c0_i32_0 = arith.constant 0 : i32
    %c0_i32_1 = arith.constant 0 : i32
    return %c0_i32, %c0_i32_0 : i32, i32
  }
  func.func @transform_7(%arg0: i32) -> (i32, i32) {
    %c0_i32 = arith.constant 0 : i32
    %c0_i32_0 = arith.constant 0 : i32
    %c0_i32_1 = arith.constant 0 : i32
    return %c0_i32, %c0_i32_0 : i32, i32
  }
  func.func @transform_8(%arg0: i32) -> (i32, i32) {
    %c0_i32 = arith.constant 0 : i32
    %c0_i32_0 = arith.constant 0 : i32
    %c0_i32_1 = arith.constant 0 : i32
    return %c0_i32, %c0_i32_0 : i32, i32
  }
  func.func @transform_9(%arg0: i32) -> (i32, i32) {
    %c0_i32 = arith.constant 0 : i32
    %c0_i32_0 = arith.constant 0 : i32
    %c0_i32_1 = arith.constant 0 : i32
    return %c0_i32, %c0_i32_0 : i32, i32
  }
  func.func @transform_10(%arg0: i32) -> (i32, i32) {
    %c0_i32 = arith.constant 0 : i32
    %c0_i32_0 = arith.constant 0 : i32
    %c0_i32_1 = arith.constant 0 : i32
    return %c0_i32, %c0_i32_0 : i32, i32
  }
  func.func @transform_11(%arg0: i32) -> (i32, i32) {
    %c0_i32 = arith.constant 0 : i32
    %c0_i32_0 = arith.constant 0 : i32
    %c0_i32_1 = arith.constant 0 : i32
    return %c0_i32, %c0_i32_0 : i32, i32
  }
  func.func @transform_12(%arg0: i32) -> (i32, i32) {
    %c0_i32 = arith.constant 0 : i32
    %c0_i32_0 = arith.constant 0 : i32
    %c0_i32_1 = arith.constant 0 : i32
    return %c0_i32, %c0_i32_0 : i32, i32
  }
  func.func @transform_13(%arg0: i32) -> (i32, i32, i32) {
    %c0_i32 = arith.constant 0 : i32
    %c0_i32_0 = arith.constant 0 : i32
    %c0_i32_1 = arith.constant 0 : i32
    return %arg0, %c0_i32, %c0_i32_0 : i32, i32, i32
  }
}

</mosaic_0001>

<llo_original>
// kernel: tpu_custom_call.1
$region0: #{tpu_custom_call.1}
  #allocation0 [shape = 'u32[]', space=smem, size = 0x4, offset = 0x4, fixed_abs, tag = 'smem constant byte address 0x4 - core index']
  #allocation1 [shape = 'u32[144,128]{1,0:T(1,128)}', space=vmem, size = 0x12000, scoped, tag = 'internal scratch']
  #allocation2 [shape = 'f32[30,128]{1,0:T(8,128)}', space=vmem, size = 0x4000, scoped, tag = 'scratch operand']
  %s0 = inlined_call_operand.vmem [shape: f32[2,32,128], index: 0, kind: input, shape index: {}]
  %s1 = inlined_call_operand.hbm [shape: f32[384,128], index: 1, kind: input, shape index: {}]
  %s2 = inlined_call_operand.vmem [shape: f32[1,128], index: 2, kind: input, shape index: {}]
  %s3 = inlined_call_operand.hbm [shape: f32[384,128], index: 3, kind: input, shape index: {}]
  %s4 = inlined_call_operand.vmem [shape: f32[1,128], index: 4, kind: input, shape index: {}]
  %s5 = inlined_call_operand.hbm [shape: f32[384,128], index: 5, kind: input, shape index: {}]
  %s6 = inlined_call_operand.vmem [shape: f32[1,128], index: 6, kind: input, shape index: {}]
  %s7 = inlined_call_operand.hbm [shape: f32[384,128], index: 7, kind: input, shape index: {}]
  %s8 = inlined_call_operand.vmem [shape: f32[1,128], index: 8, kind: input, shape index: {}]
  %s9 = inlined_call_operand.vmem [shape: f32[128,256], index: 9, kind: input, shape index: {}]
  %s10 = inlined_call_operand.vmem [shape: f32[1,256], index: 10, kind: input, shape index: {}]
  %s11 = inlined_call_operand.vmem [shape: f32[256,32], index: 11, kind: input, shape index: {}]
  %s12 = inlined_call_operand.vmem [shape: f32[1,32], index: 12, kind: input, shape index: {}]
  %s13 = inlined_call_operand.hbm [shape: f32[2,1,32], index: 13, kind: output, shape index: {}]
  %s14 = sld [smem:[#allocation0]]
  $region101: #{tpu_custom_call.1} parent=0
    _
  %s16 = ssub.s32 1, %s14
  %s17 = scalar_select 0, %s16, %s14
  $region1: #{tpu_custom_call.1} parent=0
    #allocation3 [shape = 'u8[196608]{0}', space=vmem, size = 0x30000, scoped, tag = 'input window, operand 1, single buffered']
    #allocation4 [shape = 's32[2]{0}', space=sflag, size = 0x8, scoped, tag = 'scoped memory for tpu_custom_call.1']
    #allocation5 [shape = 's32[2]{0}', space=sflag, size = 0x8, scoped, tag = 'scoped memory for tpu_custom_call.1']
    #allocation6 [shape = 'u8[196608]{0}', space=vmem, size = 0x30000, scoped, tag = 'input window, operand 3, single buffered']
    #allocation7 [shape = 's32[1]{0}', space=sflag, size = 0x4, scoped, tag = 'scoped memory for tpu_custom_call.1']
    #allocation8 [shape = 'u8[196608]{0}', space=vmem, size = 0x30000, scoped, tag = 'input window, operand 5, single buffered']
    #allocation9 [shape = 'u8[196608]{0}', space=vmem, size = 0x30000, scoped, tag = 'input window, operand 7, single buffered']
    #allocation10 [shape = 's32[1]{0}', space=sflag, size = 0x4, scoped, tag = 'scoped memory for tpu_custom_call.1']
    #allocation11 [shape = 'u8[1024]{0}', space=vmem, size = 0x400, scoped, tag = 'output window, operand 0']
    %18 = vsyncpa [#allocation4], 0
    %19 = vsyncpa [#allocation7], 0
    %20 = vsyncpa [#allocation10], 0
    %21 = vsyncpa [#allocation5], 0
    %s22 = scalar_lea.sflag [#allocation5], 1
    %23 = vsyncpa %s22, 0
    loop: start=0, step=1, limit=4
    $region2: #{tpu_custom_call.1} parent=1 // loop_pre_header
      _
    $region3: #{tpu_custom_call.1} parent=1 // loop_header
      %s25 = sphi 0, %s29
      %p26 = scmp.ge.s32.totalorder %s25, 4
      %s35 = sphi 0, %s37
      %s38 = sphi 0, %s35
      %s39 = sphi 0, %s38
      %s55 = sphi 0, %s39
      %s59 = sphi 0, %s59
      %s61 = sphi 0, %s59
      %s62 = sphi 0, %s61
      %s76 = sphi 0, %s62
      %s80 = sphi 0, %s80
      %s82 = sphi 0, %s80
      %s83 = sphi 0, %s82
      %s97 = sphi 0, %s83
      %s101 = sphi 0, %s101
      %s103 = sphi 0, %s101
      %s104 = sphi 0, %s103
      %s118 = sphi 0, %s104
      %s122 = sphi 0, %s122
      %s124 = sphi 0, %s122
      %s125 = sphi 0, %s124
      %s139 = sphi 0, %s125
      %s143 = sphi 0, %s143
      %s145 = sphi 0, %s143
      %s146 = sphi 0, %s145
      %s160 = sphi 0, %s146
      %s164 = sphi 0, %s164
      %s166 = sphi 0, %s164
      %s167 = sphi 0, %s166
      %s181 = sphi 0, %s167
      %s185 = sphi 0, %s185
      %s187 = sphi 0, %s185
      %s188 = sphi 0, %s187
      %s202 = sphi 0, %s188
      %s206 = sphi 0, %s206
      %s208 = sphi 0, %s206
      %s209 = sphi 0, %s208
      %s223 = sphi 0, %s209
      %s227 = sphi 0, %s227
      %s229 = sphi 0, %s227
      %s230 = sphi 0, %s229
      %s244 = sphi 0, %s230
      %s248 = sphi 0, %s248
      %s250 = sphi 0, %s248
      %s251 = sphi 0, %s250
      %s265 = sphi 0, %s251
      %s269 = sphi 0, %s269
      %s271 = sphi 0, %s269
      %s272 = sphi 0, %s271
      %s286 = sphi 0, %s272
      %s290 = sphi 0, %s290
      %s292 = sphi 0, %s290
      %s293 = sphi 0, %s292
      %s307 = sphi 0, %s293
      %s313 = sphi 0, %s315
      %s316 = sphi 0, %s313
      %s317 = sphi 0, %s316
      %s333 = sphi 0, %s317
    $region4: #{tpu_custom_call.1} parent=1 // loop_header_branch
      %28 = sbr.rel (%p26) target = $region8
    $region5: #{tpu_custom_call.1} parent=1 // loop_body
      %s30 = ssub.s32 %s25, 1
      %s31 = ssub.s32 %s25, 2
      %s32 = sadd.s32 %s25, 1
      %s33 = ssub.s32 %s25, %s32
      %p34 = scmp.eq.s32.totalorder %s33, 0
      %s36 = sadd.s32 %s35, 1
      %s37 = scalar_select %p34, %s35, %s36
      %p40 = pneg %p34
      %p41 = scmp.eq.s32.totalorder %s25, 1
      %p42 = por %p40, %p41
      %p43 = scmp.ne.s32.totalorder %s35, %s38
      %p44 = scmp.eq.s32.totalorder %s25, 0
      %p45 = por %p43, %p44
      %p46 = scmp.ne.s32.totalorder %s35, %s38
      %p47 = scmp.eq.s32.totalorder %s30, 1
      %p48 = por %p46, %p47
      %p49 = scmp.ne.s32.totalorder %s38, %s39
      %p50 = scmp.eq.s32.totalorder %s30, 0
      %p51 = por %p49, %p50
      %p52 = scmp.ne.s32.totalorder %s38, %s39
      %p53 = scmp.eq.s32.totalorder %s31, 1
      %p54 = por %p52, %p53
      %p56 = scmp.ne.s32.totalorder %s39, %s55
      %p57 = scmp.eq.s32.totalorder %s31, 0
      %p58 = por %p56, %p57
      %s60 = sadd.s32 %s59, 1
      %p63 = scmp.eq.s32.totalorder %s25, 1
      %p64 = scmp.ne.s32.totalorder %s59, %s61
      %p65 = scmp.eq.s32.totalorder %s25, 0
      %p66 = por %p64, %p65
      %p67 = scmp.ne.s32.totalorder %s59, %s61
      %p68 = scmp.eq.s32.totalorder %s30, 1
      %p69 = por %p67, %p68
      %p70 = scmp.ne.s32.totalorder %s61, %s62
      %p71 = scmp.eq.s32.totalorder %s30, 0
      %p72 = por %p70, %p71
      %p73 = scmp.ne.s32.totalorder %s61, %s62
      %p74 = scmp.eq.s32.totalorder %s31, 1
      %p75 = por %p73, %p74
      %p77 = scmp.ne.s32.totalorder %s62, %s76
      %p78 = scmp.eq.s32.totalorder %s31, 0
      %p79 = por %p77, %p78
      %s81 = sadd.s32 %s80, 1
      %p84 = scmp.eq.s32.totalorder %s25, 1
      %p85 = scmp.ne.s32.totalorder %s80, %s82
      %p86 = scmp.eq.s32.totalorder %s25, 0
      %p87 = por %p85, %p86
      %p88 = scmp.ne.s32.totalorder %s80, %s82
      %p89 = scmp.eq.s32.totalorder %s30, 1
      %p90 = por %p88, %p89
      %p91 = scmp.ne.s32.totalorder %s82, %s83
      %p92 = scmp.eq.s32.totalorder %s30, 0
      %p93 = por %p91, %p92
      %p94 = scmp.ne.s32.totalorder %s82, %s83
      %p95 = scmp.eq.s32.totalorder %s31, 1
      %p96 = por %p94, %p95
      %p98 = scmp.ne.s32.totalorder %s83, %s97
      %p99 = scmp.eq.s32.totalorder %s31, 0
      %p100 = por %p98, %p99
      %s102 = sadd.s32 %s101, 1
      %p105 = scmp.eq.s32.totalorder %s25, 1
      %p106 = scmp.ne.s32.totalorder %s101, %s103
      %p107 = scmp.eq.s32.totalorder %s25, 0
      %p108 = por %p106, %p107
      %p109 = scmp.ne.s32.totalorder %s101, %s103
      %p110 = scmp.eq.s32.totalorder %s30, 1
      %p111 = por %p109, %p110
      %p112 = scmp.ne.s32.totalorder %s103, %s104
      %p113 = scmp.eq.s32.totalorder %s30, 0
      %p114 = por %p112, %p113
      %p115 = scmp.ne.s32.totalorder %s103, %s104
      %p116 = scmp.eq.s32.totalorder %s31, 1
      %p117 = por %p115, %p116
      %p119 = scmp.ne.s32.totalorder %s104, %s118
      %p120 = scmp.eq.s32.totalorder %s31, 0
      %p121 = por %p119, %p120
      %s123 = sadd.s32 %s122, 1
      %p126 = scmp.eq.s32.totalorder %s25, 1
      %p127 = scmp.ne.s32.totalorder %s122, %s124
      %p128 = scmp.eq.s32.totalorder %s25, 0
      %p129 = por %p127, %p128
      %p130 = scmp.ne.s32.totalorder %s122, %s124
      %p131 = scmp.eq.s32.totalorder %s30, 1
      %p132 = por %p130, %p131
      %p133 = scmp.ne.s32.totalorder %s124, %s125
      %p134 = scmp.eq.s32.totalorder %s30, 0
      %p135 = por %p133, %p134
      %p136 = scmp.ne.s32.totalorder %s124, %s125
      %p137 = scmp.eq.s32.totalorder %s31, 1
      %p138 = por %p136, %p137
      %p140 = scmp.ne.s32.totalorder %s125, %s139
      %p141 = scmp.eq.s32.totalorder %s31, 0
      %p142 = por %p140, %p141
      %s144 = sadd.s32 %s143, 1
      %p147 = scmp.eq.s32.totalorder %s25, 1
      %p148 = scmp.ne.s32.totalorder %s143, %s145
      %p149 = scmp.eq.s32.totalorder %s25, 0
      %p150 = por %p148, %p149
      %p151 = scmp.ne.s32.totalorder %s143, %s145
      %p152 = scmp.eq.s32.totalorder %s30, 1
      %p153 = por %p151, %p152
      %p154 = scmp.ne.s32.totalorder %s145, %s146
      %p155 = scmp.eq.s32.totalorder %s30, 0
      %p156 = por %p154, %p155
      %p157 = scmp.ne.s32.totalorder %s145, %s146
      %p158 = scmp.eq.s32.totalorder %s31, 1
      %p159 = por %p157, %p158
      %p161 = scmp.ne.s32.totalorder %s146, %s160
      %p162 = scmp.eq.s32.totalorder %s31, 0
      %p163 = por %p161, %p162
      %s165 = sadd.s32 %s164, 1
      %p168 = scmp.eq.s32.totalorder %s25, 1
      %p169 = scmp.ne.s32.totalorder %s164, %s166
      %p170 = scmp.eq.s32.totalorder %s25, 0
      %p171 = por %p169, %p170
      %p172 = scmp.ne.s32.totalorder %s164, %s166
      %p173 = scmp.eq.s32.totalorder %s30, 1
      %p174 = por %p172, %p173
      %p175 = scmp.ne.s32.totalorder %s166, %s167
      %p176 = scmp.eq.s32.totalorder %s30, 0
      %p177 = por %p175, %p176
      %p178 = scmp.ne.s32.totalorder %s166, %s167
      %p179 = scmp.eq.s32.totalorder %s31, 1
      %p180 = por %p178, %p179
      %p182 = scmp.ne.s32.totalorder %s167, %s181
      %p183 = scmp.eq.s32.totalorder %s31, 0
      %p184 = por %p182, %p183
      %s186 = sadd.s32 %s185, 1
      %p189 = scmp.eq.s32.totalorder %s25, 1
      %p190 = scmp.ne.s32.totalorder %s185, %s187
      %p191 = scmp.eq.s32.totalorder %s25, 0
      %p192 = por %p190, %p191
      %p193 = scmp.ne.s32.totalorder %s185, %s187
      %p194 = scmp.eq.s32.totalorder %s30, 1
      %p195 = por %p193, %p194
      %p196 = scmp.ne.s32.totalorder %s187, %s188
      %p197 = scmp.eq.s32.totalorder %s30, 0
      %p198 = por %p196, %p197
      %p199 = scmp.ne.s32.totalorder %s187, %s188
      %p200 = scmp.eq.s32.totalorder %s31, 1
      %p201 = por %p199, %p200
      %p203 = scmp.ne.s32.totalorder %s188, %s202
      %p204 = scmp.eq.s32.totalorder %s31, 0
      %p205 = por %p203, %p204
      %s207 = sadd.s32 %s206, 1
      %p210 = scmp.eq.s32.totalorder %s25, 1
      %p211 = scmp.ne.s32.totalorder %s206, %s208
      %p212 = scmp.eq.s32.totalorder %s25, 0
      %p213 = por %p211, %p212
      %p214 = scmp.ne.s32.totalorder %s206, %s208
      %p215 = scmp.eq.s32.totalorder %s30, 1
      %p216 = por %p214, %p215
      %p217 = scmp.ne.s32.totalorder %s208, %s209
      %p218 = scmp.eq.s32.totalorder %s30, 0
      %p219 = por %p217, %p218
      %p220 = scmp.ne.s32.totalorder %s208, %s209
      %p221 = scmp.eq.s32.totalorder %s31, 1
      %p222 = por %p220, %p221
      %p224 = scmp.ne.s32.totalorder %s209, %s223
      %p225 = scmp.eq.s32.totalorder %s31, 0
      %p226 = por %p224, %p225
      %s228 = sadd.s32 %s227, 1
      %p231 = scmp.eq.s32.totalorder %s25, 1
      %p232 = scmp.ne.s32.totalorder %s227, %s229
      %p233 = scmp.eq.s32.totalorder %s25, 0
      %p234 = por %p232, %p233
      %p235 = scmp.ne.s32.totalorder %s227, %s229
      %p236 = scmp.eq.s32.totalorder %s30, 1
      %p237 = por %p235, %p236
      %p238 = scmp.ne.s32.totalorder %s229, %s230
      %p239 = scmp.eq.s32.totalorder %s30, 0
      %p240 = por %p238, %p239
      %p241 = scmp.ne.s32.totalorder %s229, %s230
      %p242 = scmp.eq.s32.totalorder %s31, 1
      %p243 = por %p241, %p242
      %p245 = scmp.ne.s32.totalorder %s230, %s244
      %p246 = scmp.eq.s32.totalorder %s31, 0
      %p247 = por %p245, %p246
      %s249 = sadd.s32 %s248, 1
      %p252 = scmp.eq.s32.totalorder %s25, 1
      %p253 = scmp.ne.s32.totalorder %s248, %s250
      %p254 = scmp.eq.s32.totalorder %s25, 0
      %p255 = por %p253, %p254
      %p256 = scmp.ne.s32.totalorder %s248, %s250
      %p257 = scmp.eq.s32.totalorder %s30, 1
      %p258 = por %p256, %p257
      %p259 = scmp.ne.s32.totalorder %s250, %s251
      %p260 = scmp.eq.s32.totalorder %s30, 0
      %p261 = por %p259, %p260
      %p262 = scmp.ne.s32.totalorder %s250, %s251
      %p263 = scmp.eq.s32.totalorder %s31, 1
      %p264 = por %p262, %p263
      %p266 = scmp.ne.s32.totalorder %s251, %s265
      %p267 = scmp.eq.s32.totalorder %s31, 0
      %p268 = por %p266, %p267
      %s270 = sadd.s32 %s269, 1
      %p273 = scmp.eq.s32.totalorder %s25, 1
      %p274 = scmp.ne.s32.totalorder %s269, %s271
      %p275 = scmp.eq.s32.totalorder %s25, 0
      %p276 = por %p274, %p275
      %p277 = scmp.ne.s32.totalorder %s269, %s271
      %p278 = scmp.eq.s32.totalorder %s30, 1
      %p279 = por %p277, %p278
      %p280 = scmp.ne.s32.totalorder %s271, %s272
      %p281 = scmp.eq.s32.totalorder %s30, 0
      %p282 = por %p280, %p281
      %p283 = scmp.ne.s32.totalorder %s271, %s272
      %p284 = scmp.eq.s32.totalorder %s31, 1
      %p285 = por %p283, %p284
      %p287 = scmp.ne.s32.totalorder %s272, %s286
      %p288 = scmp.eq.s32.totalorder %s31, 0
      %p289 = por %p287, %p288
      %s291 = sadd.s32 %s290, 1
      %p294 = scmp.eq.s32.totalorder %s25, 1
      %p295 = scmp.ne.s32.totalorder %s290, %s292
      %p296 = scmp.eq.s32.totalorder %s25, 0
      %p297 = por %p295, %p296
      %p298 = scmp.ne.s32.totalorder %s290, %s292
      %p299 = scmp.eq.s32.totalorder %s30, 1
      %p300 = por %p298, %p299
      %p301 = scmp.ne.s32.totalorder %s292, %s293
      %p302 = scmp.eq.s32.totalorder %s30, 0
      %p303 = por %p301, %p302
      %p304 = scmp.ne.s32.totalorder %s292, %s293
      %p305 = scmp.eq.s32.totalorder %s31, 1
      %p306 = por %p304, %p305
      %p308 = scmp.ne.s32.totalorder %s293, %s307
      %p309 = scmp.eq.s32.totalorder %s31, 0
      %p310 = por %p308, %p309
      %s311 = ssub.s32 %s25, %s32
      %p312 = scmp.eq.s32.totalorder %s311, 0
      %s314 = sadd.s32 %s313, 1
      %s315 = scalar_select %p312, %s313, %s314
      %p318 = pneg %p312
      %p319 = scmp.eq.s32.totalorder %s25, 1
      %p320 = por %p318, %p319
      %p321 = scmp.ne.s32.totalorder %s313, %s316
      %p322 = scmp.eq.s32.totalorder %s25, 0
      %p323 = por %p321, %p322
      %p324 = scmp.ne.s32.totalorder %s313, %s316
      %p325 = scmp.eq.s32.totalorder %s30, 1
      %p326 = por %p324, %p325
      %p327 = scmp.ne.s32.totalorder %s316, %s317
      %p328 = scmp.eq.s32.totalorder %s30, 0
      %p329 = por %p327, %p328
      %p330 = scmp.ne.s32.totalorder %s316, %s317
      %p331 = scmp.eq.s32.totalorder %s31, 1
      %p332 = por %p330, %p331
      %p334 = scmp.ne.s32.totalorder %s317, %s333
      %p335 = scmp.eq.s32.totalorder %s31, 0
      %p336 = por %p334, %p335
      %p337 = scmp.le.s32.totalorder 1, %s25
      %p338 = scmp.lt.s32.totalorder %s25, 3
      %p339 = pnand %p337, %p338
      %p340 = pneg %p339
      // Predicated region
      $region9: #{tpu_custom_call.1} parent=5 // pred_check
        _
      $region10: #{tpu_custom_call.1} parent=5 // pred_check_branch
        %342 = sbr.rel (%p339) target = $region12
      $region11: #{tpu_custom_call.1} parent=5 // pred_region
        %s343 = ssub.s32 %s25, 1
        // Predicated region
        $region13: #{tpu_custom_call.1} parent=11 // pred_check
          %p344 = pneg %p72
        $region14: #{tpu_custom_call.1} parent=11 // pred_check_branch
          %346 = sbr.rel (%p344) target = $region16
        $region15: #{tpu_custom_call.1} parent=11 // pred_region
          %s348 = ssub.s32 6144, 6144
          %349 = vsyncadd [#allocation4], %s348
          %s350 = sshll.u32 [#allocation3], 4
          %s351 = int_to_ptr.vmem [resolvable:$true] %s350
          %356 = dma.hbm_to_vmem [thread:$0]  %s1, 6144, %s351, [#allocation4], 128, 128, 8
        $region16: #{tpu_custom_call.1} parent=11 // pred_fallthru
          _
        // Predicated region
        $region17: #{tpu_custom_call.1} parent=11 // pred_check
          %p357 = pneg %p93
        $region18: #{tpu_custom_call.1} parent=11 // pred_check_branch
          %359 = sbr.rel (%p357) target = $region20
        $region19: #{tpu_custom_call.1} parent=11 // pred_region
          _
        $region20: #{tpu_custom_call.1} parent=11 // pred_fallthru
          _
        // Predicated region
        $region21: #{tpu_custom_call.1} parent=11 // pred_check
          %p360 = pneg %p114
        $region22: #{tpu_custom_call.1} parent=11 // pred_check_branch
          %362 = sbr.rel (%p360) target = $region24
        $region23: #{tpu_custom_call.1} parent=11 // pred_region
          %s364 = ssub.s32 6144, 6144
          %365 = vsyncadd [#allocation7], %s364
          %s366 = sshll.u32 [#allocation6], 4
          %s367 = int_to_ptr.vmem [resolvable:$true] %s366
          %372 = dma.hbm_to_vmem [thread:$0]  %s3, 6144, %s367, [#allocation7], 128, 128, 8
        $region24: #{tpu_custom_call.1} parent=11 // pred_fallthru
          _
        // Predicated region
        $region25: #{tpu_custom_call.1} parent=11 // pred_check
          %p373 = pneg %p135
        $region26: #{tpu_custom_call.1} parent=11 // pred_check_branch
          %375 = sbr.rel (%p373) target = $region28
        $region27: #{tpu_custom_call.1} parent=11 // pred_region
          _
        $region28: #{tpu_custom_call.1} parent=11 // pred_fallthru
          _
        // Predicated region
        $region29: #{tpu_custom_call.1} parent=11 // pred_check
          %p376 = pneg %p156
        $region30: #{tpu_custom_call.1} parent=11 // pred_check_branch
          %378 = sbr.rel (%p376) target = $region32
        $region31: #{tpu_custom_call.1} parent=11 // pred_region
          %s380 = ssub.s32 6144, 6144
          %381 = vsyncadd [#allocation7], %s380
          %s382 = sshll.u32 [#allocation8], 4
          %s383 = int_to_ptr.vmem [resolvable:$true] %s382
          %388 = dma.hbm_to_vmem [thread:$0]  %s5, 6144, %s383, [#allocation7], 128, 128, 8
        $region32: #{tpu_custom_call.1} parent=11 // pred_fallthru
          _
        // Predicated region
        $region33: #{tpu_custom_call.1} parent=11 // pred_check
          %p389 = pneg %p177
        $region34: #{tpu_custom_call.1} parent=11 // pred_check_branch
          %391 = sbr.rel (%p389) target = $region36
        $region35: #{tpu_custom_call.1} parent=11 // pred_region
          _
        $region36: #{tpu_custom_call.1} parent=11 // pred_fallthru
          _
        // Predicated region
        $region37: #{tpu_custom_call.1} parent=11 // pred_check
          %p392 = pneg %p198
        $region38: #{tpu_custom_call.1} parent=11 // pred_check_branch
          %394 = sbr.rel (%p392) target = $region40
        $region39: #{tpu_custom_call.1} parent=11 // pred_region
          %s396 = ssub.s32 6144, 6144
          %397 = vsyncadd [#allocation10], %s396
          %s398 = sshll.u32 [#allocation9], 4
          %s399 = int_to_ptr.vmem [resolvable:$true] %s398
          %404 = dma.hbm_to_vmem [thread:$0]  %s7, 6144, %s399, [#allocation10], 128, 128, 8
        $region40: #{tpu_custom_call.1} parent=11 // pred_fallthru
          _
        // Predicated region
        $region41: #{tpu_custom_call.1} parent=11 // pred_check
          %p405 = pneg %p219
        $region42: #{tpu_custom_call.1} parent=11 // pred_check_branch
          %407 = sbr.rel (%p405) target = $region44
        $region43: #{tpu_custom_call.1} parent=11 // pred_region
          _
        $region44: #{tpu_custom_call.1} parent=11 // pred_fallthru
          _
        // Predicated region
        $region45: #{tpu_custom_call.1} parent=11 // pred_check
          %p408 = pneg %p240
        $region46: #{tpu_custom_call.1} parent=11 // pred_check_branch
          %410 = sbr.rel (%p408) target = $region48
        $region47: #{tpu_custom_call.1} parent=11 // pred_region
          _
        $region48: #{tpu_custom_call.1} parent=11 // pred_fallthru
          _
        // Predicated region
        $region49: #{tpu_custom_call.1} parent=11 // pred_check
          %p411 = pneg %p261
        $region50: #{tpu_custom_call.1} parent=11 // pred_check_branch
          %413 = sbr.rel (%p411) target = $region52
        $region51: #{tpu_custom_call.1} parent=11 // pred_region
          _
        $region52: #{tpu_custom_call.1} parent=11 // pred_fallthru
          _
        // Predicated region
        $region53: #{tpu_custom_call.1} parent=11 // pred_check
          %p414 = pneg %p282
        $region54: #{tpu_custom_call.1} parent=11 // pred_check_branch
          %416 = sbr.rel (%p414) target = $region56
        $region55: #{tpu_custom_call.1} parent=11 // pred_region
          _
        $region56: #{tpu_custom_call.1} parent=11 // pred_fallthru
          _
        // Predicated region
        $region57: #{tpu_custom_call.1} parent=11 // pred_check
          %p417 = pneg %p303
        $region58: #{tpu_custom_call.1} parent=11 // pred_check_branch
          %419 = sbr.rel (%p417) target = $region60
        $region59: #{tpu_custom_call.1} parent=11 // pred_region
          _
        $region60: #{tpu_custom_call.1} parent=11 // pred_fallthru
          _
      $region12: #{tpu_custom_call.1} parent=5 // pred_fallthru
        _
      %p420 = scmp.lt.s32.totalorder %s25, 2
      // Predicated region
      $region61: #{tpu_custom_call.1} parent=5 // pred_check
        %p421 = pneg %p420
      $region62: #{tpu_custom_call.1} parent=5 // pred_check_branch
        %423 = sbr.rel (%p421) target = $region64
      $region63: #{tpu_custom_call.1} parent=5 // pred_region
        // Predicated region
        $region65: #{tpu_custom_call.1} parent=63 // pred_check
          %p424 = pneg %p45
        $region66: #{tpu_custom_call.1} parent=63 // pred_check_branch
          %426 = sbr.rel (%p424) target = $region68
        $region67: #{tpu_custom_call.1} parent=63 // pred_region
          %p427 = scmp.lt.s32.totalorder %s25, 1
          %s428 = scalar_select %p427, %s25, 1
          %s429 = smul.addr %s428, 4
          %s430 = smul.addr %s429, 8
          %s431 = scalar_lea.vmem %s0, %s430
        $region68: #{tpu_custom_call.1} parent=63 // pred_fallthru
          _
      $region64: #{tpu_custom_call.1} parent=5 // pred_fallthru
        _
      %p432 = scmp.le.s32.totalorder 1, %s25
      %p433 = scmp.lt.s32.totalorder %s25, 3
      %p434 = pnand %p432, %p433
      %p435 = pneg %p434
      // Predicated region
      $region69: #{tpu_custom_call.1} parent=5 // pred_check
        _
      $region70: #{tpu_custom_call.1} parent=5 // pred_check_branch
        %437 = sbr.rel (%p434) target = $region72
      $region71: #{tpu_custom_call.1} parent=5 // pred_region
        %s438 = ssub.s32 %s25, 1
        // Predicated region
        $region73: #{tpu_custom_call.1} parent=71 // pred_check
          %p439 = pneg %p72
        $region74: #{tpu_custom_call.1} parent=71 // pred_check_branch
          %441 = sbr.rel (%p439) target = $region76
        $region75: #{tpu_custom_call.1} parent=71 // pred_region
          %442 = dma.done [#allocation4], 6144
        $region76: #{tpu_custom_call.1} parent=71 // pred_fallthru
          _
        // Predicated region
        $region77: #{tpu_custom_call.1} parent=71 // pred_check
          %p443 = pneg %p114
        $region78: #{tpu_custom_call.1} parent=71 // pred_check_branch
          %445 = sbr.rel (%p443) target = $region80
        $region79: #{tpu_custom_call.1} parent=71 // pred_region
          %446 = dma.done [#allocation7], 6144
        $region80: #{tpu_custom_call.1} parent=71 // pred_fallthru
          _
        // Predicated region
        $region81: #{tpu_custom_call.1} parent=71 // pred_check
          %p447 = pneg %p156
        $region82: #{tpu_custom_call.1} parent=71 // pred_check_branch
          %449 = sbr.rel (%p447) target = $region84
        $region83: #{tpu_custom_call.1} parent=71 // pred_region
          %450 = dma.done [#allocation7], 6144
        $region84: #{tpu_custom_call.1} parent=71 // pred_fallthru
          _
        // Predicated region
        $region85: #{tpu_custom_call.1} parent=71 // pred_check
          %p451 = pneg %p198
        $region86: #{tpu_custom_call.1} parent=71 // pred_check_branch
          %453 = sbr.rel (%p451) target = $region88
        $region87: #{tpu_custom_call.1} parent=71 // pred_region
          %454 = dma.done [#allocation10], 6144
        $region88: #{tpu_custom_call.1} parent=71 // pred_fallthru
          _
        %p455 = scmp.lt.s32.totalorder %s30, 1
        %s456 = scalar_select %p455, %s30, 1
        %s457 = smul.addr %s456, 4
        %s458 = smul.addr %s457, 8
        %s459 = scalar_lea.vmem %s0, %s458
        %p460 = pneg %p51
        %p461 = pneg %p48
        %p462 = pneg %p72
        %p463 = pneg %p69
        %p464 = pneg %p93
        %p465 = pneg %p90
        %p466 = pneg %p114
        %p467 = pneg %p111
        %p468 = pneg %p135
        %p469 = pneg %p132
        %p470 = pneg %p156
        %p471 = pneg %p153
        %p472 = pneg %p177
        %p473 = pneg %p174
        %p474 = pneg %p198
        %p475 = pneg %p195
        %p476 = pneg %p219
        %p477 = pneg %p216
        %p478 = pneg %p240
        %p479 = pneg %p237
        %p480 = pneg %p261
        %p481 = pneg %p258
        %p482 = pneg %p282
        %p483 = pneg %p279
        %p484 = pneg %p303
        %p485 = pneg %p300
        %p486 = pneg %p329
        %p487 = pneg %p326
        %s488 = sand.u32 %s316, 1
        %s489 = scalar_lea.sflag [#allocation5], %s488
        %s490 = sand.u32 %s316, 1
        %s491 = scalar_lea.vmem [#allocation11], %s490
        %p492 = scmp.lt.s32.totalorder %s30, 1
        %s493 = scalar_select %p492, %s30, 1
        %s494 = smul.addr %s493, 4
        %s495 = smul.addr %s494, 8
        %s496 = scalar_lea.vmem %s0, %s495
        %v497 = vld [vmem:[%s496] sm:$0xff]
        %v498 = vld [vmem:[%s496 + $0x8] sm:$0xff]
        %v499 = vld [vmem:[%s496 + $0x10] sm:$0xff]
        %v500 = vld [vmem:[%s496 + $0x18] sm:$0xff]
        %vm505 = vcmask 1046528
        %v506 = vrot.slane %v497, 1
        %v507 = vrot.slane %v498, 1
        %v508 = vsel %vm505, %v506, %v507
        %v509 = vrot.slane %v499, 1
        %v510 = vsel %vm505, %v507, %v509
        %v511 = vrot.slane %v500, 1
        %v512 = vsel %vm505, %v509, %v511
        %vm517 = vcmask 1045504
        %v518 = vrot.slane %v497, 2
        %v519 = vrot.slane %v498, 2
        %v520 = vsel %vm517, %v518, %v519
        %v521 = vrot.slane %v499, 2
        %v522 = vsel %vm517, %v519, %v521
        %v523 = vrot.slane %v500, 2
        %v524 = vsel %vm517, %v521, %v523
        %v529 = vld [vmem:[#allocation3] sm:$0xff]
        %v530 = vld [vmem:[#allocation3 + $0x8] sm:$0xff]
        %v531 = vld [vmem:[#allocation3 + $0x10] sm:$0xff]
        %v532 = vld [vmem:[#allocation3 + $0x18] sm:$0xff]
        %v533 = vld [vmem:[#allocation3 + $0x20] sm:$0xff]
        %v534 = vld [vmem:[#allocation3 + $0x28] sm:$0xff]
        %v535 = vld [vmem:[#allocation3 + $0x30] sm:$0xff]
        %v536 = vld [vmem:[#allocation3 + $0x38] sm:$0xff]
        %v537 = vld [vmem:[#allocation3 + $0x40] sm:$0xff]
        %v538 = vld [vmem:[#allocation3 + $0x48] sm:$0xff]
        %v539 = vld [vmem:[#allocation3 + $0x50] sm:$0xff]
        %v540 = vld [vmem:[#allocation3 + $0x58] sm:$0xff]
        %v541 = vld [vmem:[#allocation3 + $0x60] sm:$0xff]
        %v542 = vld [vmem:[#allocation3 + $0x68] sm:$0xff]
        %v543 = vld [vmem:[#allocation3 + $0x70] sm:$0xff]
        %v544 = vld [vmem:[#allocation3 + $0x78] sm:$0xff]
        %v545 = vld [vmem:[#allocation3 + $0x80] sm:$0xff]
        %v546 = vld [vmem:[#allocation3 + $0x88] sm:$0xff]
        %v547 = vld [vmem:[#allocation3 + $0x90] sm:$0xff]
        %v548 = vld [vmem:[#allocation3 + $0x98] sm:$0xff]
        %v549 = vld [vmem:[#allocation3 + $0xa0] sm:$0xff]
        %v550 = vld [vmem:[#allocation3 + $0xa8] sm:$0xff]
        %v551 = vld [vmem:[#allocation3 + $0xb0] sm:$0xff]
        %v552 = vld [vmem:[#allocation3 + $0xb8] sm:$0xff]
        %v553 = vld [vmem:[#allocation3 + $0xc0] sm:$0xff]
        %v554 = vld [vmem:[#allocation3 + $0xc8] sm:$0xff]
        %v555 = vld [vmem:[#allocation3 + $0xd0] sm:$0xff]
        %v556 = vld [vmem:[#allocation3 + $0xd8] sm:$0xff]
        %v557 = vld [vmem:[#allocation3 + $0xe0] sm:$0xff]
        %v558 = vld [vmem:[#allocation3 + $0xe8] sm:$0xff]
        %v559 = vld [vmem:[#allocation3 + $0xf0] sm:$0xff]
        %v560 = vld [vmem:[#allocation3 + $0xf8] sm:$0xff]
        %v561 = vld [vmem:[#allocation3 + $0x100] sm:$0xff]
        %v562 = vld [vmem:[#allocation3 + $0x108] sm:$0xff]
        %v563 = vld [vmem:[#allocation3 + $0x110] sm:$0xff]
        %v564 = vld [vmem:[#allocation3 + $0x118] sm:$0xff]
        %v565 = vld [vmem:[#allocation3 + $0x120] sm:$0xff]
        %v566 = vld [vmem:[#allocation3 + $0x128] sm:$0xff]
        %v567 = vld [vmem:[#allocation3 + $0x130] sm:$0xff]
        %v568 = vld [vmem:[#allocation3 + $0x138] sm:$0xff]
        %v569 = vld [vmem:[#allocation3 + $0x140] sm:$0xff]
        %v570 = vld [vmem:[#allocation3 + $0x148] sm:$0xff]
        %v571 = vld [vmem:[#allocation3 + $0x150] sm:$0xff]
        %v572 = vld [vmem:[#allocation3 + $0x158] sm:$0xff]
        %v573 = vld [vmem:[#allocation3 + $0x160] sm:$0xff]
        %v574 = vld [vmem:[#allocation3 + $0x168] sm:$0xff]
        %v575 = vld [vmem:[#allocation3 + $0x170] sm:$0xff]
        %v576 = vld [vmem:[#allocation3 + $0x178] sm:$0xff]
        %v577 = vld [vmem:[%s2] sm:$0x1]
        %v579 = vlaneseq
        %v580 = vshrl.u32 %v579, 7
        %v581 = vsub.s32 0, %v580
        %v582 = vrot.slane %v577, %v581
        %584 = vmatprep.subr.mxu0 0.0
        %585 = vmatpush1.msra.mxu0 %v529
        %586 = vmatprep.subr.mxu0 0.0
        %587 = vmatpush1.msra.mxu0 %v530
        %588 = vmatprep.subr.mxu0 0.0
        %589 = vmatpush1.msra.mxu0 %v531
        %590 = vmatprep.subr.mxu0 0.0
        %591 = vmatpush1.msra.mxu0 %v532
        %592 = vmatprep.subr.mxu0 0.0
        %593 = vmatpush1.msra.mxu0 %v533
        %594 = vmatprep.subr.mxu0 0.0
        %595 = vmatpush1.msra.mxu0 %v534
        %596 = vmatprep.subr.mxu0 0.0
        %597 = vmatpush1.msra.mxu0 %v535
        %598 = vmatprep.subr.mxu0 0.0
        %599 = vmatpush1.msra.mxu0 %v536
        %600 = vmatprep.subr.mxu0 0.0
        %601 = vmatpush1.msra.mxu0 %v537
        %602 = vmatprep.subr.mxu0 0.0
        %603 = vmatpush1.msra.mxu0 %v538
        %604 = vmatprep.subr.mxu0 0.0
        %605 = vmatpush1.msra.mxu0 %v539
        %606 = vmatprep.subr.mxu0 0.0
        %607 = vmatpush1.msra.mxu0 %v540
        %608 = vmatprep.subr.mxu0 0.0
        %609 = vmatpush1.msra.mxu0 %v541
        %610 = vmatprep.subr.mxu0 0.0
        %611 = vmatpush1.msra.mxu0 %v542
        %612 = vmatprep.subr.mxu0 0.0
        %613 = vmatpush1.msra.mxu0 %v543
        %614 = vmatprep.subr.mxu0 0.0
        %615 = vmatpush1.msra.mxu0 %v544
        %616 = vmatprep.subr.mxu0 0.0
        %617 = vmatpush1.msra.mxu0 %v545
        %618 = vmatprep.subr.mxu0 0.0
        %619 = vmatpush1.msra.mxu0 %v546
        %620 = vmatprep.subr.mxu0 0.0
        %621 = vmatpush1.msra.mxu0 %v547
        %622 = vmatprep.subr.mxu0 0.0
        %623 = vmatpush1.msra.mxu0 %v548
        %624 = vmatprep.subr.mxu0 0.0
        %625 = vmatpush1.msra.mxu0 %v549
        %626 = vmatprep.subr.mxu0 0.0
        %627 = vmatpush1.msra.mxu0 %v550
        %628 = vmatprep.subr.mxu0 0.0
        %629 = vmatpush1.msra.mxu0 %v551
        %630 = vmatprep.subr.mxu0 0.0
        %631 = vmatpush1.msra.mxu0 %v552
        %632 = vmatprep.subr.mxu0 0.0
        %633 = vmatpush1.msra.mxu0 %v553
        %634 = vmatprep.subr.mxu0 0.0
        %635 = vmatpush1.msra.mxu0 %v554
        %636 = vmatprep.subr.mxu0 0.0
        %637 = vmatpush1.msra.mxu0 %v555
        %638 = vmatprep.subr.mxu0 0.0
        %639 = vmatpush1.msra.mxu0 %v556
        %640 = vmatprep.subr.mxu0 0.0
        %641 = vmatpush1.msra.mxu0 %v557
        %642 = vmatprep.subr.mxu0 0.0
        %643 = vmatpush1.msra.mxu0 %v558
        %644 = vmatprep.subr.mxu0 0.0
        %645 = vmatpush1.msra.mxu0 %v559
        %646 = vmatprep.subr.mxu0 0.0
        %647 = vmatpush1.msra.mxu0 %v560
        %648 = vmatprep.mubr.f32.mxu0 %v508
        %649 = vmatmul.mubr.f32.gmra.mrb[0].mxu0 %v497
        %v650 = vpop.f32.mrb[0].mxu0
        %v651 = vadd.f32 %v582, %v650
        %v652 = vpop.f32.mrb[0].mxu0
        %653 = vmatprep.mubr.f32.mxu0 %v510
        %654 = vmatmul.mubr.f32.gmra.mrb[0].mxu0 %v498
        %v655 = vpop.f32.mrb[0].mxu0
        %v656 = vadd.f32 %v582, %v655
        %v657 = vpop.f32.mrb[0].mxu0
        %658 = vmatprep.mubr.f32.mxu0 %v512
        %659 = vmatmul.mubr.f32.gmra.mrb[0].mxu0 %v499
        %v660 = vpop.f32.mrb[0].mxu0
        %v661 = vadd.f32 %v582, %v660
        %v662 = vpop.f32.mrb[0].mxu0
        %663 = vmatprep.mubr.f32.mxu0 %v511
        %664 = vmatmul.mubr.f32.gmra.mrb[0].mxu0 %v500
        %v665 = vpop.f32.mrb[0].mxu0
        %v666 = vadd.f32 %v582, %v665
        %v667 = vpop.f32.mrb[0].mxu0
        %668 = vdwg.mxu0
        %669 = vmatprep.subr.mxu0 0.0
        %670 = vmatpush1.msra.mxu0 %v561
        %671 = vmatprep.subr.mxu0 0.0
        %672 = vmatpush1.msra.mxu0 %v562
        %673 = vmatprep.subr.mxu0 0.0
        %674 = vmatpush1.msra.mxu0 %v563
        %675 = vmatprep.subr.mxu0 0.0
        %676 = vmatpush1.msra.mxu0 %v564
        %677 = vmatprep.subr.mxu0 0.0
        %678 = vmatpush1.msra.mxu0 %v565
        %679 = vmatprep.subr.mxu0 0.0
        %680 = vmatpush1.msra.mxu0 %v566
        %681 = vmatprep.subr.mxu0 0.0
        %682 = vmatpush1.msra.mxu0 %v567
        %683 = vmatprep.subr.mxu0 0.0
        %684 = vmatpush1.msra.mxu0 %v568
        %685 = vmatprep.subr.mxu0 0.0
        %686 = vmatpush1.msra.mxu0 %v569
        %687 = vmatprep.subr.mxu0 0.0
        %688 = vmatpush1.msra.mxu0 %v570
        %689 = vmatprep.subr.mxu0 0.0
        %690 = vmatpush1.msra.mxu0 %v571
        %691 = vmatprep.subr.mxu0 0.0
        %692 = vmatpush1.msra.mxu0 %v572
        %693 = vmatprep.subr.mxu0 0.0
        %694 = vmatpush1.msra.mxu0 %v573
        %695 = vmatprep.subr.mxu0 0.0
        %696 = vmatpush1.msra.mxu0 %v574
        %697 = vmatprep.subr.mxu0 0.0
        %698 = vmatpush1.msra.mxu0 %v575
        %699 = vmatprep.subr.mxu0 0.0
        %700 = vmatpush1.msra.mxu0 %v576
        %701 = vmatprep.subr.mxu0 0.0
        %702 = vmatpush1.msra.mxu0 0.0
        %703 = vmatprep.subr.mxu0 0.0
        %704 = vmatpush1.msra.mxu0 0.0
        %705 = vmatprep.subr.mxu0 0.0
        %706 = vmatpush1.msra.mxu0 0.0
        %707 = vmatprep.subr.mxu0 0.0
        %708 = vmatpush1.msra.mxu0 0.0
        %709 = vmatprep.subr.mxu0 0.0
        %710 = vmatpush1.msra.mxu0 0.0
        %711 = vmatprep.subr.mxu0 0.0
        %712 = vmatpush1.msra.mxu0 0.0
        %713 = vmatprep.subr.mxu0 0.0
        %714 = vmatpush1.msra.mxu0 0.0
        %715 = vmatprep.subr.mxu0 0.0
        %716 = vmatpush1.msra.mxu0 0.0
        %717 = vmatprep.subr.mxu0 0.0
        %718 = vmatpush1.msra.mxu0 0.0
        %719 = vmatprep.subr.mxu0 0.0
        %720 = vmatpush1.msra.mxu0 0.0
        %721 = vmatprep.subr.mxu0 0.0
        %722 = vmatpush1.msra.mxu0 0.0
        %723 = vmatprep.subr.mxu0 0.0
        %724 = vmatpush1.msra.mxu0 0.0
        %725 = vmatprep.subr.mxu0 0.0
        %726 = vmatpush1.msra.mxu0 0.0
        %727 = vmatprep.subr.mxu0 0.0
        %728 = vmatpush1.msra.mxu0 0.0
        %729 = vmatprep.subr.mxu0 0.0
        %730 = vmatpush1.msra.mxu0 0.0
        %731 = vmatprep.subr.mxu0 0.0
        %732 = vmatpush1.msra.mxu0 0.0
        %733 = vmatprep.mubr.f32.mxu0 0.0
        %734 = vmatmul.mubr.f32.gmra.mrb[0].mxu0 %v520
        %v735 = vpop.f32.mrb[0].mxu0
        %v736 = vadd.f32 %v651, %v735
        %v737 = vpop.f32.mrb[0].mxu0
        %738 = vmatprep.mubr.f32.mxu0 0.0
        %739 = vmatmul.mubr.f32.gmra.mrb[0].mxu0 %v522
        %v740 = vpop.f32.mrb[0].mxu0
        %v741 = vadd.f32 %v656, %v740
        %v742 = vpop.f32.mrb[0].mxu0
        %743 = vmatprep.mubr.f32.mxu0 0.0
        %744 = vmatmul.mubr.f32.gmra.mrb[0].mxu0 %v524
        %v745 = vpop.f32.mrb[0].mxu0
        %v746 = vadd.f32 %v661, %v745
        %v747 = vpop.f32.mrb[0].mxu0
        %748 = vmatprep.mubr.f32.mxu0 0.0
        %749 = vmatmul.mubr.f32.gmra.mrb[0].mxu0 %v523
        %v750 = vpop.f32.mrb[0].mxu0
        %v751 = vadd.f32 %v666, %v750
        %v752 = vpop.f32.mrb[0].mxu0
        %753 = vdwg.mxu0
        %vm754 = vcmp.gt.f32.partialorder %v736, 0.0
        %vm755 = vcmp.gt.f32.partialorder %v741, 0.0
        %vm756 = vcmp.gt.f32.partialorder %v746, 0.0
        %vm757 = vcmp.gt.f32.partialorder %v751, 0.0
        %v758 = vmin.f32 %v736, 0.0
        %v759 = vmin.f32 %v741, 0.0
        %v760 = vmin.f32 %v746, 0.0
        %v761 = vmin.f32 %v751, 0.0
        %v762 = vmul.f32 %v758, 1.442695
        %v763 = vpow.pop %v762
        %v764 = vmul.f32 %v759, 1.442695
        %v765 = vpow.pop %v764
        %v766 = vmul.f32 %v760, 1.442695
        %v767 = vpow.pop %v766
        %v768 = vmul.f32 %v761, 1.442695
        %v769 = vpow.pop %v768
        %v770 = vsub.f32 %v763, 1.0
        %v771 = vsub.f32 %v765, 1.0
        %v772 = vsub.f32 %v767, 1.0
        %v773 = vsub.f32 %v769, 1.0
        %v774 = vsel %vm754, %v736, %v770
        %v775 = vsel %vm755, %v741, %v771
        %v776 = vsel %vm756, %v746, %v772
        %v777 = vsel %vm757, %v751, %v773
        %778 = vst [vmem:[#allocation2] sm:$0xff] %v774
        %779 = vst [vmem:[#allocation2 + $0x8] sm:$0xff] %v775
        %780 = vst [vmem:[#allocation2 + $0x10] sm:$0xff] %v776
        %781 = vst [vmem:[#allocation2 + $0x18] sm:$0x3f] %v777
        %v782 = vld [vmem:[#allocation2] ss:$2 sm:$0xff]
        %s783 = scalar_lea.vmem [#allocation2], 16
        %v784 = vld [vmem:[%s783] ss:$2 sm:$0x3f]
        %s785 = scalar_lea.vmem [#allocation2], 1
        %v786 = vld [vmem:[%s785] ss:$2 sm:$0xff]
        %s787 = scalar_lea.vmem [#allocation2], 17
        %v788 = vld [vmem:[%s787] ss:$2 sm:$0x3f]
        %s789 = scalar_lea.vmem [#allocation2], 2
        %v790 = vld [vmem:[%s789] ss:$2 sm:$0xff]
        %s791 = scalar_lea.vmem [#allocation2], 18
        %v792 = vld [vmem:[%s791] ss:$2 sm:$0x3f]
        %v793 = vld [vmem:[#allocation6] sm:$0xff]
        %v794 = vld [vmem:[#allocation6 + $0x8] sm:$0xff]
        %v795 = vld [vmem:[#allocation6 + $0x10] sm:$0xff]
        %v796 = vld [vmem:[#allocation6 + $0x18] sm:$0xff]
        %v797 = vld [vmem:[#allocation6 + $0x20] sm:$0xff]
        %v798 = vld [vmem:[#allocation6 + $0x28] sm:$0xff]
        %v799 = vld [vmem:[#allocation6 + $0x30] sm:$0xff]
        %v800 = vld [vmem:[#allocation6 + $0x38] sm:$0xff]
        %v801 = vld [vmem:[#allocation6 + $0x40] sm:$0xff]
        %v802 = vld [vmem:[#allocation6 + $0x48] sm:$0xff]
        %v803 = vld [vmem:[#allocation6 + $0x50] sm:$0xff]
        %v804 = vld [vmem:[#allocation6 + $0x58] sm:$0xff]
        %v805 = vld [vmem:[#allocation6 + $0x60] sm:$0xff]
        %v806 = vld [vmem:[#allocation6 + $0x68] sm:$0xff]
        %v807 = vld [vmem:[#allocation6 + $0x70] sm:$0xff]
        %v808 = vld [vmem:[#allocation6 + $0x78] sm:$0xff]
        %v809 = vld [vmem:[#allocation6 + $0x80] sm:$0xff]
        %v810 = vld [vmem:[#allocation6 + $0x88] sm:$0xff]
        %v811 = vld [vmem:[#allocation6 + $0x90] sm:$0xff]
        %v812 = vld [vmem:[#allocation6 + $0x98] sm:$0xff]
        %v813 = vld [vmem:[#allocation6 + $0xa0] sm:$0xff]
        %v814 = vld [vmem:[#allocation6 + $0xa8] sm:$0xff]
        %v815 = vld [vmem:[#allocation6 + $0xb0] sm:$0xff]
        %v816 = vld [vmem:[#allocation6 + $0xb8] sm:$0xff]
        %v817 = vld [vmem:[#allocation6 + $0xc0] sm:$0xff]
        %v818 = vld [vmem:[#allocation6 + $0xc8] sm:$0xff]
        %v819 = vld [vmem:[#allocation6 + $0xd0] sm:$0xff]
        %v820 = vld [vmem:[#allocation6 + $0xd8] sm:$0xff]
        %v821 = vld [vmem:[#allocation6 + $0xe0] sm:$0xff]
        %v822 = vld [vmem:[#allocation6 + $0xe8] sm:$0xff]
        %v823 = vld [vmem:[#allocation6 + $0xf0] sm:$0xff]
        %v824 = vld [vmem:[#allocation6 + $0xf8] sm:$0xff]
        %v825 = vld [vmem:[#allocation6 + $0x100] sm:$0xff]
        %v826 = vld [vmem:[#allocation6 + $0x108] sm:$0xff]
        %v827 = vld [vmem:[#allocation6 + $0x110] sm:$0xff]
        %v828 = vld [vmem:[#allocation6 + $0x118] sm:$0xff]
        %v829 = vld [vmem:[#allocation6 + $0x120] sm:$0xff]
        %v830 = vld [vmem:[#allocation6 + $0x128] sm:$0xff]
        %v831 = vld [vmem:[#allocation6 + $0x130] sm:$0xff]
        %v832 = vld [vmem:[#allocation6 + $0x138] sm:$0xff]
        %v833 = vld [vmem:[#allocation6 + $0x140] sm:$0xff]
        %v834 = vld [vmem:[#allocation6 + $0x148] sm:$0xff]
        %v835 = vld [vmem:[#allocation6 + $0x150] sm:$0xff]
        %v836 = vld [vmem:[#allocation6 + $0x158] sm:$0xff]
        %v837 = vld [vmem:[#allocation6 + $0x160] sm:$0xff]
        %v838 = vld [vmem:[#allocation6 + $0x168] sm:$0xff]
        %v839 = vld [vmem:[#allocation6 + $0x170] sm:$0xff]
        %v840 = vld [vmem:[#allocation6 + $0x178] sm:$0xff]
        %v841 = vld [vmem:[%s4] sm:$0x1]
        %v843 = vlaneseq
        %v844 = vshrl.u32 %v843, 7
        %v845 = vsub.s32 0, %v844
        %v846 = vrot.slane %v841, %v845
        %848 = vmatprep.subr.mxu0 0.0
        %849 = vmatpush1.msra.mxu0 %v793
        %850 = vmatprep.subr.mxu0 0.0
        %851 = vmatpush1.msra.mxu0 %v794
        %852 = vmatprep.subr.mxu0 0.0
        %853 = vmatpush1.msra.mxu0 %v795
        %854 = vmatprep.subr.mxu0 0.0
        %855 = vmatpush1.msra.mxu0 %v796
        %856 = vmatprep.subr.mxu0 0.0
        %857 = vmatpush1.msra.mxu0 %v797
        %858 = vmatprep.subr.mxu0 0.0
        %859 = vmatpush1.msra.mxu0 %v798
        %860 = vmatprep.subr.mxu0 0.0
        %861 = vmatpush1.msra.mxu0 %v799
        %862 = vmatprep.subr.mxu0 0.0
        %863 = vmatpush1.msra.mxu0 %v800
        %864 = vmatprep.subr.mxu0 0.0
        %865 = vmatpush1.msra.mxu0 %v801
        %866 = vmatprep.subr.mxu0 0.0
        %867 = vmatpush1.msra.mxu0 %v802
        %868 = vmatprep.subr.mxu0 0.0
        %869 = vmatpush1.msra.mxu0 %v803
        %870 = vmatprep.subr.mxu0 0.0
        %871 = vmatpush1.msra.mxu0 %v804
        %872 = vmatprep.subr.mxu0 0.0
        %873 = vmatpush1.msra.mxu0 %v805
        %874 = vmatprep.subr.mxu0 0.0
        %875 = vmatpush1.msra.mxu0 %v806
        %876 = vmatprep.subr.mxu0 0.0
        %877 = vmatpush1.msra.mxu0 %v807
        %878 = vmatprep.subr.mxu0 0.0
        %879 = vmatpush1.msra.mxu0 %v808
        %880 = vmatprep.subr.mxu0 0.0
        %881 = vmatpush1.msra.mxu0 %v809
        %882 = vmatprep.subr.mxu0 0.0
        %883 = vmatpush1.msra.mxu0 %v810
        %884 = vmatprep.subr.mxu0 0.0
        %885 = vmatpush1.msra.mxu0 %v811
        %886 = vmatprep.subr.mxu0 0.0
        %887 = vmatpush1.msra.mxu0 %v812
        %888 = vmatprep.subr.mxu0 0.0
        %889 = vmatpush1.msra.mxu0 %v813
        %890 = vmatprep.subr.mxu0 0.0
        %891 = vmatpush1.msra.mxu0 %v814
        %892 = vmatprep.subr.mxu0 0.0
        %893 = vmatpush1.msra.mxu0 %v815
        %894 = vmatprep.subr.mxu0 0.0
        %895 = vmatpush1.msra.mxu0 %v816
        %896 = vmatprep.subr.mxu0 0.0
        %897 = vmatpush1.msra.mxu0 %v817
        %898 = vmatprep.subr.mxu0 0.0
        %899 = vmatpush1.msra.mxu0 %v818
        %900 = vmatprep.subr.mxu0 0.0
        %901 = vmatpush1.msra.mxu0 %v819
        %902 = vmatprep.subr.mxu0 0.0
        %903 = vmatpush1.msra.mxu0 %v820
        %904 = vmatprep.subr.mxu0 0.0
        %905 = vmatpush1.msra.mxu0 %v821
        %906 = vmatprep.subr.mxu0 0.0
        %907 = vmatpush1.msra.mxu0 %v822
        %908 = vmatprep.subr.mxu0 0.0
        %909 = vmatpush1.msra.mxu0 %v823
        %910 = vmatprep.subr.mxu0 0.0
        %911 = vmatpush1.msra.mxu0 %v824
        %912 = vmatprep.mubr.f32.mxu0 %v786
        %913 = vmatmul.mubr.f32.gmra.mrb[0].mxu0 %v782
        %v914 = vpop.f32.mrb[0].mxu0
        %v915 = vadd.f32 %v846, %v914
        %v916 = vpop.f32.mrb[0].mxu0
        %917 = vmatprep.mubr.f32.mxu0 %v788
        %918 = vmatmul.mubr.f32.gmra.mrb[0].mxu0 %v784
        %v919 = vpop.f32.mrb[0].mxu0
        %v920 = vadd.f32 %v846, %v919
        %v921 = vpop.f32.mrb[0].mxu0
        %922 = vdwg.mxu0
        %923 = vmatprep.subr.mxu0 0.0
        %924 = vmatpush1.msra.mxu0 %v825
        %925 = vmatprep.subr.mxu0 0.0
        %926 = vmatpush1.msra.mxu0 %v826
        %927 = vmatprep.subr.mxu0 0.0
        %928 = vmatpush1.msra.mxu0 %v827
        %929 = vmatprep.subr.mxu0 0.0
        %930 = vmatpush1.msra.mxu0 %v828
        %931 = vmatprep.subr.mxu0 0.0
        %932 = vmatpush1.msra.mxu0 %v829
        %933 = vmatprep.subr.mxu0 0.0
        %934 = vmatpush1.msra.mxu0 %v830
        %935 = vmatprep.subr.mxu0 0.0
        %936 = vmatpush1.msra.mxu0 %v831
        %937 = vmatprep.subr.mxu0 0.0
        %938 = vmatpush1.msra.mxu0 %v832
        %939 = vmatprep.subr.mxu0 0.0
        %940 = vmatpush1.msra.mxu0 %v833
        %941 = vmatprep.subr.mxu0 0.0
        %942 = vmatpush1.msra.mxu0 %v834
        %943 = vmatprep.subr.mxu0 0.0
        %944 = vmatpush1.msra.mxu0 %v835
        %945 = vmatprep.subr.mxu0 0.0
        %946 = vmatpush1.msra.mxu0 %v836
        %947 = vmatprep.subr.mxu0 0.0
        %948 = vmatpush1.msra.mxu0 %v837
        %949 = vmatprep.subr.mxu0 0.0
        %950 = vmatpush1.msra.mxu0 %v838
        %951 = vmatprep.subr.mxu0 0.0
        %952 = vmatpush1.msra.mxu0 %v839
        %953 = vmatprep.subr.mxu0 0.0
        %954 = vmatpush1.msra.mxu0 %v840
        %955 = vmatprep.subr.mxu0 0.0
        %956 = vmatpush1.msra.mxu0 0.0
        %957 = vmatprep.subr.mxu0 0.0
        %958 = vmatpush1.msra.mxu0 0.0
        %959 = vmatprep.subr.mxu0 0.0
        %960 = vmatpush1.msra.mxu0 0.0
        %961 = vmatprep.subr.mxu0 0.0
        %962 = vmatpush1.msra.mxu0 0.0
        %963 = vmatprep.subr.mxu0 0.0
        %964 = vmatpush1.msra.mxu0 0.0
        %965 = vmatprep.subr.mxu0 0.0
        %966 = vmatpush1.msra.mxu0 0.0
        %967 = vmatprep.subr.mxu0 0.0
        %968 = vmatpush1.msra.mxu0 0.0
        %969 = vmatprep.subr.mxu0 0.0
        %970 = vmatpush1.msra.mxu0 0.0
        %971 = vmatprep.subr.mxu0 0.0
        %972 = vmatpush1.msra.mxu0 0.0
        %973 = vmatprep.subr.mxu0 0.0
        %974 = vmatpush1.msra.mxu0 0.0
        %975 = vmatprep.subr.mxu0 0.0
        %976 = vmatpush1.msra.mxu0 0.0
        %977 = vmatprep.subr.mxu0 0.0
        %978 = vmatpush1.msra.mxu0 0.0
        %979 = vmatprep.subr.mxu0 0.0
        %980 = vmatpush1.msra.mxu0 0.0
        %981 = vmatprep.subr.mxu0 0.0
        %982 = vmatpush1.msra.mxu0 0.0
        %983 = vmatprep.subr.mxu0 0.0
        %984 = vmatpush1.msra.mxu0 0.0
        %985 = vmatprep.subr.mxu0 0.0
        %986 = vmatpush1.msra.mxu0 0.0
        %987 = vmatprep.mubr.f32.mxu0 0.0
        %988 = vmatmul.mubr.f32.gmra.mrb[0].mxu0 %v790
        %v989 = vpop.f32.mrb[0].mxu0
        %v990 = vadd.f32 %v915, %v989
        %v991 = vpop.f32.mrb[0].mxu0
        %992 = vmatprep.mubr.f32.mxu0 0.0
        %993 = vmatmul.mubr.f32.gmra.mrb[0].mxu0 %v792
        %v994 = vpop.f32.mrb[0].mxu0
        %v995 = vadd.f32 %v920, %v994
        %v996 = vpop.f32.mrb[0].mxu0
        %997 = vdwg.mxu0
        %vm998 = vcmp.gt.f32.partialorder %v990, 0.0
        %vm999 = vcmp.gt.f32.partialorder %v995, 0.0
        %v1000 = vmin.f32 %v990, 0.0
        %v1001 = vmin.f32 %v995, 0.0
        %v1002 = vmul.f32 %v1000, 1.442695
        %v1003 = vpow.pop %v1002
        %v1004 = vmul.f32 %v1001, 1.442695
        %v1005 = vpow.pop %v1004
        %v1006 = vsub.f32 %v1003, 1.0
        %v1007 = vsub.f32 %v1005, 1.0
        %v1008 = vsel %vm998, %v990, %v1006
        %v1009 = vsel %vm999, %v995, %v1007
        %1010 = vst [vmem:[#allocation2] sm:$0xff] %v1008
        %1011 = vst [vmem:[#allocation2 + $0x8] sm:$0x3f] %v1009
        %v1012 = vld [vmem:[#allocation2] ss:$2 sm:$0x3f]
        %v1013 = vld [vmem:[%s785] ss:$2 sm:$0x3f]
        %s1014 = scalar_lea.vmem [#allocation2], 2
        %v1015 = vld [vmem:[%s1014] ss:$2 sm:$0x3f]
        %v1016 = vld [vmem:[#allocation8] sm:$0xff]
        %v1017 = vld [vmem:[#allocation8 + $0x8] sm:$0xff]
        %v1018 = vld [vmem:[#allocation8 + $0x10] sm:$0xff]
        %v1019 = vld [vmem:[#allocation8 + $0x18] sm:$0xff]
        %v1020 = vld [vmem:[#allocation8 + $0x20] sm:$0xff]
        %v1021 = vld [vmem:[#allocation8 + $0x28] sm:$0xff]
        %v1022 = vld [vmem:[#allocation8 + $0x30] sm:$0xff]
        %v1023 = vld [vmem:[#allocation8 + $0x38] sm:$0xff]
        %v1024 = vld [vmem:[#allocation8 + $0x40] sm:$0xff]
        %v1025 = vld [vmem:[#allocation8 + $0x48] sm:$0xff]
        %v1026 = vld [vmem:[#allocation8 + $0x50] sm:$0xff]
        %v1027 = vld [vmem:[#allocation8 + $0x58] sm:$0xff]
        %v1028 = vld [vmem:[#allocation8 + $0x60] sm:$0xff]
        %v1029 = vld [vmem:[#allocation8 + $0x68] sm:$0xff]
        %v1030 = vld [vmem:[#allocation8 + $0x70] sm:$0xff]
        %v1031 = vld [vmem:[#allocation8 + $0x78] sm:$0xff]
        %v1032 = vld [vmem:[#allocation8 + $0x80] sm:$0xff]
        %v1033 = vld [vmem:[#allocation8 + $0x88] sm:$0xff]
        %v1034 = vld [vmem:[#allocation8 + $0x90] sm:$0xff]
        %v1035 = vld [vmem:[#allocation8 + $0x98] sm:$0xff]
        %v1036 = vld [vmem:[#allocation8 + $0xa0] sm:$0xff]
        %v1037 = vld [vmem:[#allocation8 + $0xa8] sm:$0xff]
        %v1038 = vld [vmem:[#allocation8 + $0xb0] sm:$0xff]
        %v1039 = vld [vmem:[#allocation8 + $0xb8] sm:$0xff]
        %v1040 = vld [vmem:[#allocation8 + $0xc0] sm:$0xff]
        %v1041 = vld [vmem:[#allocation8 + $0xc8] sm:$0xff]
        %v1042 = vld [vmem:[#allocation8 + $0xd0] sm:$0xff]
        %v1043 = vld [vmem:[#allocation8 + $0xd8] sm:$0xff]
        %v1044 = vld [vmem:[#allocation8 + $0xe0] sm:$0xff]
        %v1045 = vld [vmem:[#allocation8 + $0xe8] sm:$0xff]
        %v1046 = vld [vmem:[#allocation8 + $0xf0] sm:$0xff]
        %v1047 = vld [vmem:[#allocation8 + $0xf8] sm:$0xff]
        %v1048 = vld [vmem:[#allocation8 + $0x100] sm:$0xff]
        %v1049 = vld [vmem:[#allocation8 + $0x108] sm:$0xff]
        %v1050 = vld [vmem:[#allocation8 + $0x110] sm:$0xff]
        %v1051 = vld [vmem:[#allocation8 + $0x118] sm:$0xff]
        %v1052 = vld [vmem:[#allocation8 + $0x120] sm:$0xff]
        %v1053 = vld [vmem:[#allocation8 + $0x128] sm:$0xff]
        %v1054 = vld [vmem:[#allocation8 + $0x130] sm:$0xff]
        %v1055 = vld [vmem:[#allocation8 + $0x138] sm:$0xff]
        %v1056 = vld [vmem:[#allocation8 + $0x140] sm:$0xff]
        %v1057 = vld [vmem:[#allocation8 + $0x148] sm:$0xff]
        %v1058 = vld [vmem:[#allocation8 + $0x150] sm:$0xff]
        %v1059 = vld [vmem:[#allocation8 + $0x158] sm:$0xff]
        %v1060 = vld [vmem:[#allocation8 + $0x160] sm:$0xff]
        %v1061 = vld [vmem:[#allocation8 + $0x168] sm:$0xff]
        %v1062 = vld [vmem:[#allocation8 + $0x170] sm:$0xff]
        %v1063 = vld [vmem:[#allocation8 + $0x178] sm:$0xff]
        %v1064 = vld [vmem:[%s6] sm:$0x1]
        %v1066 = vlaneseq
        %v1067 = vshrl.u32 %v1066, 7
        %v1068 = vsub.s32 0, %v1067
        %v1069 = vrot.slane %v1064, %v1068
        %1071 = vmatprep.subr.mxu0 0.0
        %1072 = vmatpush1.msra.mxu0 %v1016
        %1073 = vmatprep.subr.mxu0 0.0
        %1074 = vmatpush1.msra.mxu0 %v1017
        %1075 = vmatprep.subr.mxu0 0.0
        %1076 = vmatpush1.msra.mxu0 %v1018
        %1077 = vmatprep.subr.mxu0 0.0
        %1078 = vmatpush1.msra.mxu0 %v1019
        %1079 = vmatprep.subr.mxu0 0.0
        %1080 = vmatpush1.msra.mxu0 %v1020
        %1081 = vmatprep.subr.mxu0 0.0
        %1082 = vmatpush1.msra.mxu0 %v1021
        %1083 = vmatprep.subr.mxu0 0.0
        %1084 = vmatpush1.msra.mxu0 %v1022
        %1085 = vmatprep.subr.mxu0 0.0
        %1086 = vmatpush1.msra.mxu0 %v1023
        %1087 = vmatprep.subr.mxu0 0.0
        %1088 = vmatpush1.msra.mxu0 %v1024
        %1089 = vmatprep.subr.mxu0 0.0
        %1090 = vmatpush1.msra.mxu0 %v1025
        %1091 = vmatprep.subr.mxu0 0.0
        %1092 = vmatpush1.msra.mxu0 %v1026
        %1093 = vmatprep.subr.mxu0 0.0
        %1094 = vmatpush1.msra.mxu0 %v1027
        %1095 = vmatprep.subr.mxu0 0.0
        %1096 = vmatpush1.msra.mxu0 %v1028
        %1097 = vmatprep.subr.mxu0 0.0
        %1098 = vmatpush1.msra.mxu0 %v1029
        %1099 = vmatprep.subr.mxu0 0.0
        %1100 = vmatpush1.msra.mxu0 %v1030
        %1101 = vmatprep.subr.mxu0 0.0
        %1102 = vmatpush1.msra.mxu0 %v1031
        %1103 = vmatprep.subr.mxu0 0.0
        %1104 = vmatpush1.msra.mxu0 %v1032
        %1105 = vmatprep.subr.mxu0 0.0
        %1106 = vmatpush1.msra.mxu0 %v1033
        %1107 = vmatprep.subr.mxu0 0.0
        %1108 = vmatpush1.msra.mxu0 %v1034
        %1109 = vmatprep.subr.mxu0 0.0
        %1110 = vmatpush1.msra.mxu0 %v1035
        %1111 = vmatprep.subr.mxu0 0.0
        %1112 = vmatpush1.msra.mxu0 %v1036
        %1113 = vmatprep.subr.mxu0 0.0
        %1114 = vmatpush1.msra.mxu0 %v1037
        %1115 = vmatprep.subr.mxu0 0.0
        %1116 = vmatpush1.msra.mxu0 %v1038
        %1117 = vmatprep.subr.mxu0 0.0
        %1118 = vmatpush1.msra.mxu0 %v1039
        %1119 = vmatprep.subr.mxu0 0.0
        %1120 = vmatpush1.msra.mxu0 %v1040
        %1121 = vmatprep.subr.mxu0 0.0
        %1122 = vmatpush1.msra.mxu0 %v1041
        %1123 = vmatprep.subr.mxu0 0.0
        %1124 = vmatpush1.msra.mxu0 %v1042
        %1125 = vmatprep.subr.mxu0 0.0
        %1126 = vmatpush1.msra.mxu0 %v1043
        %1127 = vmatprep.subr.mxu0 0.0
        %1128 = vmatpush1.msra.mxu0 %v1044
        %1129 = vmatprep.subr.mxu0 0.0
        %1130 = vmatpush1.msra.mxu0 %v1045
        %1131 = vmatprep.subr.mxu0 0.0
        %1132 = vmatpush1.msra.mxu0 %v1046
        %1133 = vmatprep.subr.mxu0 0.0
        %1134 = vmatpush1.msra.mxu0 %v1047
        %1135 = vmatprep.mubr.f32.mxu0 %v1013
        %1136 = vmatmul.mubr.f32.gmra.mrb[0].mxu0 %v1012
        %v1137 = vpop.f32.mrb[0].mxu0
        %v1138 = vadd.f32 %v1069, %v1137
        %v1139 = vpop.f32.mrb[0].mxu0
        %1140 = vdwg.mxu0
        %1141 = vmatprep.subr.mxu0 0.0
        %1142 = vmatpush1.msra.mxu0 %v1048
        %1143 = vmatprep.subr.mxu0 0.0
        %1144 = vmatpush1.msra.mxu0 %v1049
        %1145 = vmatprep.subr.mxu0 0.0
        %1146 = vmatpush1.msra.mxu0 %v1050
        %1147 = vmatprep.subr.mxu0 0.0
        %1148 = vmatpush1.msra.mxu0 %v1051
        %1149 = vmatprep.subr.mxu0 0.0
        %1150 = vmatpush1.msra.mxu0 %v1052
        %1151 = vmatprep.subr.mxu0 0.0
        %1152 = vmatpush1.msra.mxu0 %v1053
        %1153 = vmatprep.subr.mxu0 0.0
        %1154 = vmatpush1.msra.mxu0 %v1054
        %1155 = vmatprep.subr.mxu0 0.0
        %1156 = vmatpush1.msra.mxu0 %v1055
        %1157 = vmatprep.subr.mxu0 0.0
        %1158 = vmatpush1.msra.mxu0 %v1056
        %1159 = vmatprep.subr.mxu0 0.0
        %1160 = vmatpush1.msra.mxu0 %v1057
        %1161 = vmatprep.subr.mxu0 0.0
        %1162 = vmatpush1.msra.mxu0 %v1058
        %1163 = vmatprep.subr.mxu0 0.0
        %1164 = vmatpush1.msra.mxu0 %v1059
        %1165 = vmatprep.subr.mxu0 0.0
        %1166 = vmatpush1.msra.mxu0 %v1060
        %1167 = vmatprep.subr.mxu0 0.0
        %1168 = vmatpush1.msra.mxu0 %v1061
        %1169 = vmatprep.subr.mxu0 0.0
        %1170 = vmatpush1.msra.mxu0 %v1062
        %1171 = vmatprep.subr.mxu0 0.0
        %1172 = vmatpush1.msra.mxu0 %v1063
        %1173 = vmatprep.subr.mxu0 0.0
        %1174 = vmatpush1.msra.mxu0 0.0
        %1175 = vmatprep.subr.mxu0 0.0
        %1176 = vmatpush1.msra.mxu0 0.0
        %1177 = vmatprep.subr.mxu0 0.0
        %1178 = vmatpush1.msra.mxu0 0.0
        %1179 = vmatprep.subr.mxu0 0.0
        %1180 = vmatpush1.msra.mxu0 0.0
        %1181 = vmatprep.subr.mxu0 0.0
        %1182 = vmatpush1.msra.mxu0 0.0
        %1183 = vmatprep.subr.mxu0 0.0
        %1184 = vmatpush1.msra.mxu0 0.0
        %1185 = vmatprep.subr.mxu0 0.0
        %1186 = vmatpush1.msra.mxu0 0.0
        %1187 = vmatprep.subr.mxu0 0.0
        %1188 = vmatpush1.msra.mxu0 0.0
        %1189 = vmatprep.subr.mxu0 0.0
        %1190 = vmatpush1.msra.mxu0 0.0
        %1191 = vmatprep.subr.mxu0 0.0
        %1192 = vmatpush1.msra.mxu0 0.0
        %1193 = vmatprep.subr.mxu0 0.0
        %1194 = vmatpush1.msra.mxu0 0.0
        %1195 = vmatprep.subr.mxu0 0.0
        %1196 = vmatpush1.msra.mxu0 0.0
        %1197 = vmatprep.subr.mxu0 0.0
        %1198 = vmatpush1.msra.mxu0 0.0
        %1199 = vmatprep.subr.mxu0 0.0
        %1200 = vmatpush1.msra.mxu0 0.0
        %1201 = vmatprep.subr.mxu0 0.0
        %1202 = vmatpush1.msra.mxu0 0.0
        %1203 = vmatprep.subr.mxu0 0.0
        %1204 = vmatpush1.msra.mxu0 0.0
        %1205 = vmatprep.mubr.f32.mxu0 0.0
        %1206 = vmatmul.mubr.f32.gmra.mrb[0].mxu0 %v1015
        %v1207 = vpop.f32.mrb[0].mxu0
        %v1208 = vadd.f32 %v1138, %v1207
        %v1209 = vpop.f32.mrb[0].mxu0
        %1210 = vdwg.mxu0
        %vm1211 = vcmp.gt.f32.partialorder %v1208, 0.0
        %v1212 = vmin.f32 %v1208, 0.0
        %v1213 = vmul.f32 %v1212, 1.442695
        %v1214 = vpow.pop %v1213
        %v1215 = vsub.f32 %v1214, 1.0
        %v1216 = vsel %vm1211, %v1208, %v1215
        %1217 = vst [vmem:[#allocation2] sm:$0x3f] %v1216
        %v1218 = vld [vmem:[#allocation2] sm:$0xf]
        %v1219 = vld [vmem:[#allocation2 + $0x1] sm:$0xf]
        %v1220 = vld [vmem:[#allocation2 + $0x2] sm:$0xf]
        %v1221 = vld [vmem:[#allocation9] sm:$0xff]
        %v1222 = vld [vmem:[#allocation9 + $0x8] sm:$0xff]
        %v1223 = vld [vmem:[#allocation9 + $0x10] sm:$0xff]
        %v1224 = vld [vmem:[#allocation9 + $0x18] sm:$0xff]
        %v1225 = vld [vmem:[#allocation9 + $0x20] sm:$0xff]
        %v1226 = vld [vmem:[#allocation9 + $0x28] sm:$0xff]
        %v1227 = vld [vmem:[#allocation9 + $0x30] sm:$0xff]
        %v1228 = vld [vmem:[#allocation9 + $0x38] sm:$0xff]
        %v1229 = vld [vmem:[#allocation9 + $0x40] sm:$0xff]
        %v1230 = vld [vmem:[#allocation9 + $0x48] sm:$0xff]
        %v1231 = vld [vmem:[#allocation9 + $0x50] sm:$0xff]
        %v1232 = vld [vmem:[#allocation9 + $0x58] sm:$0xff]
        %v1233 = vld [vmem:[#allocation9 + $0x60] sm:$0xff]
        %v1234 = vld [vmem:[#allocation9 + $0x68] sm:$0xff]
        %v1235 = vld [vmem:[#allocation9 + $0x70] sm:$0xff]
        %v1236 = vld [vmem:[#allocation9 + $0x78] sm:$0xff]
        %v1237 = vld [vmem:[#allocation9 + $0x80] sm:$0xff]
        %v1238 = vld [vmem:[#allocation9 + $0x88] sm:$0xff]
        %v1239 = vld [vmem:[#allocation9 + $0x90] sm:$0xff]
        %v1240 = vld [vmem:[#allocation9 + $0x98] sm:$0xff]
        %v1241 = vld [vmem:[#allocation9 + $0xa0] sm:$0xff]
        %v1242 = vld [vmem:[#allocation9 + $0xa8] sm:$0xff]
        %v1243 = vld [vmem:[#allocation9 + $0xb0] sm:$0xff]
        %v1244 = vld [vmem:[#allocation9 + $0xb8] sm:$0xff]
        %v1245 = vld [vmem:[#allocation9 + $0xc0] sm:$0xff]
        %v1246 = vld [vmem:[#allocation9 + $0xc8] sm:$0xff]
        %v1247 = vld [vmem:[#allocation9 + $0xd0] sm:$0xff]
        %v1248 = vld [vmem:[#allocation9 + $0xd8] sm:$0xff]
        %v1249 = vld [vmem:[#allocation9 + $0xe0] sm:$0xff]
        %v1250 = vld [vmem:[#allocation9 + $0xe8] sm:$0xff]
        %v1251 = vld [vmem:[#allocation9 + $0xf0] sm:$0xff]
        %v1252 = vld [vmem:[#allocation9 + $0xf8] sm:$0xff]
        %v1253 = vld [vmem:[#allocation9 + $0x100] sm:$0xff]
        %v1254 = vld [vmem:[#allocation9 + $0x108] sm:$0xff]
        %v1255 = vld [vmem:[#allocation9 + $0x110] sm:$0xff]
        %v1256 = vld [vmem:[#allocation9 + $0x118] sm:$0xff]
        %v1257 = vld [vmem:[#allocation9 + $0x120] sm:$0xff]
        %v1258 = vld [vmem:[#allocation9 + $0x128] sm:$0xff]
        %v1259 = vld [vmem:[#allocation9 + $0x130] sm:$0xff]
        %v1260 = vld [vmem:[#allocation9 + $0x138] sm:$0xff]
        %v1261 = vld [vmem:[#allocation9 + $0x140] sm:$0xff]
        %v1262 = vld [vmem:[#allocation9 + $0x148] sm:$0xff]
        %v1263 = vld [vmem:[#allocation9 + $0x150] sm:$0xff]
        %v1264 = vld [vmem:[#allocation9 + $0x158] sm:$0xff]
        %v1265 = vld [vmem:[#allocation9 + $0x160] sm:$0xff]
        %v1266 = vld [vmem:[#allocation9 + $0x168] sm:$0xff]
        %v1267 = vld [vmem:[#allocation9 + $0x170] sm:$0xff]
        %v1268 = vld [vmem:[#allocation9 + $0x178] sm:$0xff]
        %v1269 = vld [vmem:[%s8] sm:$0x1]
        %v1271 = vlaneseq
        %v1272 = vshrl.u32 %v1271, 7
        %v1273 = vsub.s32 0, %v1272
        %v1274 = vrot.slane %v1269, %v1273
        %1276 = vmatprep.subr.mxu0 0.0
        %1277 = vmatpush1.msra.mxu0 %v1221
        %1278 = vmatprep.subr.mxu0 0.0
        %1279 = vmatpush1.msra.mxu0 %v1222
        %1280 = vmatprep.subr.mxu0 0.0
        %1281 = vmatpush1.msra.mxu0 %v1223
        %1282 = vmatprep.subr.mxu0 0.0
        %1283 = vmatpush1.msra.mxu0 %v1224
        %1284 = vmatprep.subr.mxu0 0.0
        %1285 = vmatpush1.msra.mxu0 %v1225
        %1286 = vmatprep.subr.mxu0 0.0
        %1287 = vmatpush1.msra.mxu0 %v1226
        %1288 = vmatprep.subr.mxu0 0.0
        %1289 = vmatpush1.msra.mxu0 %v1227
        %1290 = vmatprep.subr.mxu0 0.0
        %1291 = vmatpush1.msra.mxu0 %v1228
        %1292 = vmatprep.subr.mxu0 0.0
        %1293 = vmatpush1.msra.mxu0 %v1229
        %1294 = vmatprep.subr.mxu0 0.0
        %1295 = vmatpush1.msra.mxu0 %v1230
        %1296 = vmatprep.subr.mxu0 0.0
        %1297 = vmatpush1.msra.mxu0 %v1231
        %1298 = vmatprep.subr.mxu0 0.0
        %1299 = vmatpush1.msra.mxu0 %v1232
        %1300 = vmatprep.subr.mxu0 0.0
        %1301 = vmatpush1.msra.mxu0 %v1233
        %1302 = vmatprep.subr.mxu0 0.0
        %1303 = vmatpush1.msra.mxu0 %v1234
        %1304 = vmatprep.subr.mxu0 0.0
        %1305 = vmatpush1.msra.mxu0 %v1235
        %1306 = vmatprep.subr.mxu0 0.0
        %1307 = vmatpush1.msra.mxu0 %v1236
        %1308 = vmatprep.subr.mxu0 0.0
        %1309 = vmatpush1.msra.mxu0 %v1237
        %1310 = vmatprep.subr.mxu0 0.0
        %1311 = vmatpush1.msra.mxu0 %v1238
        %1312 = vmatprep.subr.mxu0 0.0
        %1313 = vmatpush1.msra.mxu0 %v1239
        %1314 = vmatprep.subr.mxu0 0.0
        %1315 = vmatpush1.msra.mxu0 %v1240
        %1316 = vmatprep.subr.mxu0 0.0
        %1317 = vmatpush1.msra.mxu0 %v1241
        %1318 = vmatprep.subr.mxu0 0.0
        %1319 = vmatpush1.msra.mxu0 %v1242
        %1320 = vmatprep.subr.mxu0 0.0
        %1321 = vmatpush1.msra.mxu0 %v1243
        %1322 = vmatprep.subr.mxu0 0.0
        %1323 = vmatpush1.msra.mxu0 %v1244
        %1324 = vmatprep.subr.mxu0 0.0
        %1325 = vmatpush1.msra.mxu0 %v1245
        %1326 = vmatprep.subr.mxu0 0.0
        %1327 = vmatpush1.msra.mxu0 %v1246
        %1328 = vmatprep.subr.mxu0 0.0
        %1329 = vmatpush1.msra.mxu0 %v1247
        %1330 = vmatprep.subr.mxu0 0.0
        %1331 = vmatpush1.msra.mxu0 %v1248
        %1332 = vmatprep.subr.mxu0 0.0
        %1333 = vmatpush1.msra.mxu0 %v1249
        %1334 = vmatprep.subr.mxu0 0.0
        %1335 = vmatpush1.msra.mxu0 %v1250
        %1336 = vmatprep.subr.mxu0 0.0
        %1337 = vmatpush1.msra.mxu0 %v1251
        %1338 = vmatprep.subr.mxu0 0.0
        %1339 = vmatpush1.msra.mxu0 %v1252
        %1340 = vmatprep.mubr.f32.mxu0 %v1219
        %1341 = vmatmul.mubr.f32.gmra.mrb[0].mxu0 %v1218
        %v1342 = vpop.f32.mrb[0].mxu0
        %v1343 = vadd.f32 %v1274, %v1342
        %v1344 = vpop.f32.mrb[0].mxu0
        %1345 = vdwg.mxu0
        %1346 = vmatprep.subr.mxu0 0.0
        %1347 = vmatpush1.msra.mxu0 %v1253
        %1348 = vmatprep.subr.mxu0 0.0
        %1349 = vmatpush1.msra.mxu0 %v1254
        %1350 = vmatprep.subr.mxu0 0.0
        %1351 = vmatpush1.msra.mxu0 %v1255
        %1352 = vmatprep.subr.mxu0 0.0
        %1353 = vmatpush1.msra.mxu0 %v1256
        %1354 = vmatprep.subr.mxu0 0.0
        %1355 = vmatpush1.msra.mxu0 %v1257
        %1356 = vmatprep.subr.mxu0 0.0
        %1357 = vmatpush1.msra.mxu0 %v1258
        %1358 = vmatprep.subr.mxu0 0.0
        %1359 = vmatpush1.msra.mxu0 %v1259
        %1360 = vmatprep.subr.mxu0 0.0
        %1361 = vmatpush1.msra.mxu0 %v1260
        %1362 = vmatprep.subr.mxu0 0.0
        %1363 = vmatpush1.msra.mxu0 %v1261
        %1364 = vmatprep.subr.mxu0 0.0
        %1365 = vmatpush1.msra.mxu0 %v1262
        %1366 = vmatprep.subr.mxu0 0.0
        %1367 = vmatpush1.msra.mxu0 %v1263
        %1368 = vmatprep.subr.mxu0 0.0
        %1369 = vmatpush1.msra.mxu0 %v1264
        %1370 = vmatprep.subr.mxu0 0.0
        %1371 = vmatpush1.msra.mxu0 %v1265
        %1372 = vmatprep.subr.mxu0 0.0
        %1373 = vmatpush1.msra.mxu0 %v1266
        %1374 = vmatprep.subr.mxu0 0.0
        %1375 = vmatpush1.msra.mxu0 %v1267
        %1376 = vmatprep.subr.mxu0 0.0
        %1377 = vmatpush1.msra.mxu0 %v1268
        %1378 = vmatprep.subr.mxu0 0.0
        %1379 = vmatpush1.msra.mxu0 0.0
        %1380 = vmatprep.subr.mxu0 0.0
        %1381 = vmatpush1.msra.mxu0 0.0
        %1382 = vmatprep.subr.mxu0 0.0
        %1383 = vmatpush1.msra.mxu0 0.0
        %1384 = vmatprep.subr.mxu0 0.0
        %1385 = vmatpush1.msra.mxu0 0.0
        %1386 = vmatprep.subr.mxu0 0.0
        %1387 = vmatpush1.msra.mxu0 0.0
        %1388 = vmatprep.subr.mxu0 0.0
        %1389 = vmatpush1.msra.mxu0 0.0
        %1390 = vmatprep.subr.mxu0 0.0
        %1391 = vmatpush1.msra.mxu0 0.0
        %1392 = vmatprep.subr.mxu0 0.0
        %1393 = vmatpush1.msra.mxu0 0.0
        %1394 = vmatprep.subr.mxu0 0.0
        %1395 = vmatpush1.msra.mxu0 0.0
        %1396 = vmatprep.subr.mxu0 0.0
        %1397 = vmatpush1.msra.mxu0 0.0
        %1398 = vmatprep.subr.mxu0 0.0
        %1399 = vmatpush1.msra.mxu0 0.0
        %1400 = vmatprep.subr.mxu0 0.0
        %1401 = vmatpush1.msra.mxu0 0.0
        %1402 = vmatprep.subr.mxu0 0.0
        %1403 = vmatpush1.msra.mxu0 0.0
        %1404 = vmatprep.subr.mxu0 0.0
        %1405 = vmatpush1.msra.mxu0 0.0
        %1406 = vmatprep.subr.mxu0 0.0
        %1407 = vmatpush1.msra.mxu0 0.0
        %1408 = vmatprep.subr.mxu0 0.0
        %1409 = vmatpush1.msra.mxu0 0.0
        %1410 = vmatprep.mubr.f32.mxu0 0.0
        %1411 = vmatmul.mubr.f32.gmra.mrb[0].mxu0 %v1220
        %v1412 = vpop.f32.mrb[0].mxu0
        %v1413 = vadd.f32 %v1343, %v1412
        %v1414 = vpop.f32.mrb[0].mxu0
        %1415 = vdwg.mxu0
        %vm1416 = vcmp.gt.f32.partialorder %v1413, 0.0
        %v1417 = vmin.f32 %v1413, 0.0
        %v1418 = vmul.f32 %v1417, 1.442695
        %v1419 = vpow.pop %v1418
        %v1420 = vsub.f32 %v1419, 1.0
        %v1421 = vsel %vm1416, %v1413, %v1420
        %vm1422 = vcmask 1043456
        %v1423 = vsel %vm1422, %v1421, 0.0
        %v1424 = vrot.slane %v1423, 4
        %v1425 = vadd.f32 %v1423, %v1424
        %v1426 = vrot.slane %v1425, 2
        %v1427 = vadd.f32 %v1425, %v1426
        %v1428 = vrot.slane %v1427, 1
        %v1429 = vadd.f32 %v1427, %v1428
        %v1430 = vrcp.pop 4.0
        %v1431 = vmul.f32 %v1429, %v1430
        %v1432 = vld [vmem:[%s9] sm:$0xff]
        %v1433 = vld [vmem:[%s9 + $0x8] sm:$0xff]
        %v1434 = vld [vmem:[%s9 + $0x10] sm:$0xff]
        %v1435 = vld [vmem:[%s9 + $0x18] sm:$0xff]
        %v1436 = vld [vmem:[%s9 + $0x20] sm:$0xff]
        %v1437 = vld [vmem:[%s9 + $0x28] sm:$0xff]
        %v1438 = vld [vmem:[%s9 + $0x30] sm:$0xff]
        %v1439 = vld [vmem:[%s9 + $0x38] sm:$0xff]
        %v1440 = vld [vmem:[%s9 + $0x40] sm:$0xff]
        %v1441 = vld [vmem:[%s9 + $0x48] sm:$0xff]
        %v1442 = vld [vmem:[%s9 + $0x50] sm:$0xff]
        %v1443 = vld [vmem:[%s9 + $0x58] sm:$0xff]
        %v1444 = vld [vmem:[%s9 + $0x60] sm:$0xff]
        %v1445 = vld [vmem:[%s9 + $0x68] sm:$0xff]
        %v1446 = vld [vmem:[%s9 + $0x70] sm:$0xff]
        %v1447 = vld [vmem:[%s9 + $0x78] sm:$0xff]
        %v1448 = vld [vmem:[%s9 + $0x80] sm:$0xff]
        %v1449 = vld [vmem:[%s9 + $0x88] sm:$0xff]
        %v1450 = vld [vmem:[%s9 + $0x90] sm:$0xff]
        %v1451 = vld [vmem:[%s9 + $0x98] sm:$0xff]
        %v1452 = vld [vmem:[%s9 + $0xa0] sm:$0xff]
        %v1453 = vld [vmem:[%s9 + $0xa8] sm:$0xff]
        %v1454 = vld [vmem:[%s9 + $0xb0] sm:$0xff]
        %v1455 = vld [vmem:[%s9 + $0xb8] sm:$0xff]
        %v1456 = vld [vmem:[%s9 + $0xc0] sm:$0xff]
        %v1457 = vld [vmem:[%s9 + $0xc8] sm:$0xff]
        %v1458 = vld [vmem:[%s9 + $0xd0] sm:$0xff]
        %v1459 = vld [vmem:[%s9 + $0xd8] sm:$0xff]
        %v1460 = vld [vmem:[%s9 + $0xe0] sm:$0xff]
        %v1461 = vld [vmem:[%s9 + $0xe8] sm:$0xff]
        %v1462 = vld [vmem:[%s9 + $0xf0] sm:$0xff]
        %v1463 = vld [vmem:[%s9 + $0xf8] sm:$0xff]
        %v1464 = vld [vmem:[%s10] sm:$0x3]
        %v1466 = vlaneseq
        %v1467 = vshrl.u32 %v1466, 7
        %v1468 = vsub.s32 0, %v1467
        %v1469 = vrot.slane %v1464, %v1468
        %v1470 = vlaneseq
        %v1471 = vshrl.u32 %v1470, 7
        %v1472 = vsub.s32 1, %v1471
        %v1473 = vrot.slane %v1464, %v1472
        %1476 = vmatprep.subr.mxu0 %v1433
        %1477 = vmatpush1.msra.mxu0 %v1432
        %1478 = vmatprep.subr.mxu0 %v1435
        %1479 = vmatpush1.msra.mxu0 %v1434
        %1480 = vmatprep.subr.mxu0 %v1437
        %1481 = vmatpush1.msra.mxu0 %v1436
        %1482 = vmatprep.subr.mxu0 %v1439
        %1483 = vmatpush1.msra.mxu0 %v1438
        %1484 = vmatprep.subr.mxu0 %v1441
        %1485 = vmatpush1.msra.mxu0 %v1440
        %1486 = vmatprep.subr.mxu0 %v1443
        %1487 = vmatpush1.msra.mxu0 %v1442
        %1488 = vmatprep.subr.mxu0 %v1445
        %1489 = vmatpush1.msra.mxu0 %v1444
        %1490 = vmatprep.subr.mxu0 %v1447
        %1491 = vmatpush1.msra.mxu0 %v1446
        %1492 = vmatprep.subr.mxu0 %v1449
        %1493 = vmatpush1.msra.mxu0 %v1448
        %1494 = vmatprep.subr.mxu0 %v1451
        %1495 = vmatpush1.msra.mxu0 %v1450
        %1496 = vmatprep.subr.mxu0 %v1453
        %1497 = vmatpush1.msra.mxu0 %v1452
        %1498 = vmatprep.subr.mxu0 %v1455
        %1499 = vmatpush1.msra.mxu0 %v1454
        %1500 = vmatprep.subr.mxu0 %v1457
        %1501 = vmatpush1.msra.mxu0 %v1456
        %1502 = vmatprep.subr.mxu0 %v1459
        %1503 = vmatpush1.msra.mxu0 %v1458
        %1504 = vmatprep.subr.mxu0 %v1461
        %1505 = vmatpush1.msra.mxu0 %v1460
        %1506 = vmatprep.subr.mxu0 %v1463
        %1507 = vmatpush1.msra.mxu0 %v1462
        %1508 = vmatprep.subr.mxu0 0.0
        %1509 = vmatpush1.msra.mxu0 0.0
        %1510 = vmatprep.subr.mxu0 0.0
        %1511 = vmatpush1.msra.mxu0 0.0
        %1512 = vmatprep.subr.mxu0 0.0
        %1513 = vmatpush1.msra.mxu0 0.0
        %1514 = vmatprep.subr.mxu0 0.0
        %1515 = vmatpush1.msra.mxu0 0.0
        %1516 = vmatprep.subr.mxu0 0.0
        %1517 = vmatpush1.msra.mxu0 0.0
        %1518 = vmatprep.subr.mxu0 0.0
        %1519 = vmatpush1.msra.mxu0 0.0
        %1520 = vmatprep.subr.mxu0 0.0
        %1521 = vmatpush1.msra.mxu0 0.0
        %1522 = vmatprep.subr.mxu0 0.0
        %1523 = vmatpush1.msra.mxu0 0.0
        %1524 = vmatprep.subr.mxu0 0.0
        %1525 = vmatpush1.msra.mxu0 0.0
        %1526 = vmatprep.subr.mxu0 0.0
        %1527 = vmatpush1.msra.mxu0 0.0
        %1528 = vmatprep.subr.mxu0 0.0
        %1529 = vmatpush1.msra.mxu0 0.0
        %1530 = vmatprep.subr.mxu0 0.0
        %1531 = vmatpush1.msra.mxu0 0.0
        %1532 = vmatprep.subr.mxu0 0.0
        %1533 = vmatpush1.msra.mxu0 0.0
        %1534 = vmatprep.subr.mxu0 0.0
        %1535 = vmatpush1.msra.mxu0 0.0
        %1536 = vmatprep.subr.mxu0 0.0
        %1537 = vmatpush1.msra.mxu0 0.0
        %1538 = vmatprep.subr.mxu0 0.0
        %1539 = vmatpush1.msra.mxu0 0.0
        %1540 = vmatprep.mubr.f32.mxu0 0.0
        %1541 = vmatmul.mubr.f32.gmra.mrb[0].mxu0 %v1431
        %v1542 = vpop.f32.mrb[0].mxu0
        %v1543 = vadd.f32 %v1469, %v1542
        %v1544 = vpop.f32.mrb[0].mxu0
        %v1545 = vadd.f32 %v1473, %v1544
        %1546 = vdwg.mxu0
        %v1547 = vmax.f32 %v1543, 0.0
        %v1548 = vmax.f32 %v1545, 0.0
        %v1549 = vld [vmem:[%s11] sm:$0xff]
        %v1550 = vld [vmem:[%s11 + $0x8] sm:$0xff]
        %v1551 = vld [vmem:[%s11 + $0x10] sm:$0xff]
        %v1552 = vld [vmem:[%s11 + $0x18] sm:$0xff]
        %v1553 = vld [vmem:[%s11 + $0x20] sm:$0xff]
        %v1554 = vld [vmem:[%s11 + $0x28] sm:$0xff]
        %v1555 = vld [vmem:[%s11 + $0x30] sm:$0xff]
        %v1556 = vld [vmem:[%s11 + $0x38] sm:$0xff]
        %v1557 = vld [vmem:[%s11 + $0x40] sm:$0xff]
        %v1558 = vld [vmem:[%s11 + $0x48] sm:$0xff]
        %v1559 = vld [vmem:[%s11 + $0x50] sm:$0xff]
        %v1560 = vld [vmem:[%s11 + $0x58] sm:$0xff]
        %v1561 = vld [vmem:[%s11 + $0x60] sm:$0xff]
        %v1562 = vld [vmem:[%s11 + $0x68] sm:$0xff]
        %v1563 = vld [vmem:[%s11 + $0x70] sm:$0xff]
        %v1564 = vld [vmem:[%s11 + $0x78] sm:$0xff]
        %v1565 = vld [vmem:[%s11 + $0x80] sm:$0xff]
        %v1566 = vld [vmem:[%s11 + $0x88] sm:$0xff]
        %v1567 = vld [vmem:[%s11 + $0x90] sm:$0xff]
        %v1568 = vld [vmem:[%s11 + $0x98] sm:$0xff]
        %v1569 = vld [vmem:[%s11 + $0xa0] sm:$0xff]
        %v1570 = vld [vmem:[%s11 + $0xa8] sm:$0xff]
        %v1571 = vld [vmem:[%s11 + $0xb0] sm:$0xff]
        %v1572 = vld [vmem:[%s11 + $0xb8] sm:$0xff]
        %v1573 = vld [vmem:[%s11 + $0xc0] sm:$0xff]
        %v1574 = vld [vmem:[%s11 + $0xc8] sm:$0xff]
        %v1575 = vld [vmem:[%s11 + $0xd0] sm:$0xff]
        %v1576 = vld [vmem:[%s11 + $0xd8] sm:$0xff]
        %v1577 = vld [vmem:[%s11 + $0xe0] sm:$0xff]
        %v1578 = vld [vmem:[%s11 + $0xe8] sm:$0xff]
        %v1579 = vld [vmem:[%s11 + $0xf0] sm:$0xff]
        %v1580 = vld [vmem:[%s11 + $0xf8] sm:$0xff]
        %v1581 = vld [vmem:[%s12] sm:$0x1]
        %1582 = vmatprep.subr.mxu0 0.0
        %1583 = vmatpush1.msra.mxu0 %v1549
        %1584 = vmatprep.subr.mxu0 0.0
        %1585 = vmatpush1.msra.mxu0 %v1550
        %1586 = vmatprep.subr.mxu0 0.0
        %1587 = vmatpush1.msra.mxu0 %v1551
        %1588 = vmatprep.subr.mxu0 0.0
        %1589 = vmatpush1.msra.mxu0 %v1552
        %1590 = vmatprep.subr.mxu0 0.0
        %1591 = vmatpush1.msra.mxu0 %v1553
        %1592 = vmatprep.subr.mxu0 0.0
        %1593 = vmatpush1.msra.mxu0 %v1554
        %1594 = vmatprep.subr.mxu0 0.0
        %1595 = vmatpush1.msra.mxu0 %v1555
        %1596 = vmatprep.subr.mxu0 0.0
        %1597 = vmatpush1.msra.mxu0 %v1556
        %1598 = vmatprep.subr.mxu0 0.0
        %1599 = vmatpush1.msra.mxu0 %v1557
        %1600 = vmatprep.subr.mxu0 0.0
        %1601 = vmatpush1.msra.mxu0 %v1558
        %1602 = vmatprep.subr.mxu0 0.0
        %1603 = vmatpush1.msra.mxu0 %v1559
        %1604 = vmatprep.subr.mxu0 0.0
        %1605 = vmatpush1.msra.mxu0 %v1560
        %1606 = vmatprep.subr.mxu0 0.0
        %1607 = vmatpush1.msra.mxu0 %v1561
        %1608 = vmatprep.subr.mxu0 0.0
        %1609 = vmatpush1.msra.mxu0 %v1562
        %1610 = vmatprep.subr.mxu0 0.0
        %1611 = vmatpush1.msra.mxu0 %v1563
        %1612 = vmatprep.subr.mxu0 0.0
        %1613 = vmatpush1.msra.mxu0 %v1564
        %1614 = vmatprep.subr.mxu0 0.0
        %1615 = vmatpush1.msra.mxu0 %v1565
        %1616 = vmatprep.subr.mxu0 0.0
        %1617 = vmatpush1.msra.mxu0 %v1566
        %1618 = vmatprep.subr.mxu0 0.0
        %1619 = vmatpush1.msra.mxu0 %v1567
        %1620 = vmatprep.subr.mxu0 0.0
        %1621 = vmatpush1.msra.mxu0 %v1568
        %1622 = vmatprep.subr.mxu0 0.0
        %1623 = vmatpush1.msra.mxu0 %v1569
        %1624 = vmatprep.subr.mxu0 0.0
        %1625 = vmatpush1.msra.mxu0 %v1570
        %1626 = vmatprep.subr.mxu0 0.0
        %1627 = vmatpush1.msra.mxu0 %v1571
        %1628 = vmatprep.subr.mxu0 0.0
        %1629 = vmatpush1.msra.mxu0 %v1572
        %1630 = vmatprep.subr.mxu0 0.0
        %1631 = vmatpush1.msra.mxu0 %v1573
        %1632 = vmatprep.subr.mxu0 0.0
        %1633 = vmatpush1.msra.mxu0 %v1574
        %1634 = vmatprep.subr.mxu0 0.0
        %1635 = vmatpush1.msra.mxu0 %v1575
        %1636 = vmatprep.subr.mxu0 0.0
        %1637 = vmatpush1.msra.mxu0 %v1576
        %1638 = vmatprep.subr.mxu0 0.0
        %1639 = vmatpush1.msra.mxu0 %v1577
        %1640 = vmatprep.subr.mxu0 0.0
        %1641 = vmatpush1.msra.mxu0 %v1578
        %1642 = vmatprep.subr.mxu0 0.0
        %1643 = vmatpush1.msra.mxu0 %v1579
        %1644 = vmatprep.subr.mxu0 0.0
        %1645 = vmatpush1.msra.mxu0 %v1580
        %1646 = vmatprep.mubr.f32.mxu0 %v1548
        %1647 = vmatmul.mubr.f32.gmra.mrb[0].mxu0 %v1547
        %v1648 = vpop.f32.mrb[0].mxu0
        %v1649 = vadd.f32 %v1581, %v1648
        %v1650 = vpop.f32.mrb[0].mxu0
        %1651 = vdwg.mxu0
        %vm1652 = vcmask 253952
        %1653 = vst.msk [vmem:[%s491] sm:$0x1] %vm1652, %v1649
        %s1654 = sand.u32 %s316, 1
        %s1655 = scalar_lea.sflag [#allocation5], %s1654
        %s1656 = sand.u32 %s316, 1
        %s1657 = scalar_lea.vmem [#allocation11], %s1656
        // Predicated region
        $region89: #{tpu_custom_call.1} parent=71 // pred_check
          %p1658 = pneg %p326
        $region90: #{tpu_custom_call.1} parent=71 // pred_check_branch
          %1660 = sbr.rel (%p1658) target = $region92
        $region91: #{tpu_custom_call.1} parent=71 // pred_region
          %s1662 = ssub.s32 16, 16
          %1663 = vsyncadd %s1655, %s1662
          %s1664 = smul.addr %s30, 16
          %s1665 = scalar_lea.hbm %s13, %s1664
          %s1667 = sshll.u32 %s1657, 4
          %s1668 = int_to_ptr.vmem [resolvable:$true] %s1667
          %1670 = dma.vmem_to_hbm [thread:$0]  %s1668, 16, %s1665, %s1655
        $region92: #{tpu_custom_call.1} parent=71 // pred_fallthru
          _
      $region72: #{tpu_custom_call.1} parent=5 // pred_fallthru
        _
      %p1671 = scmp.le.s32.totalorder 2, %s25
      // Predicated region
      $region93: #{tpu_custom_call.1} parent=5 // pred_check
        %p1672 = pneg %p1671
      $region94: #{tpu_custom_call.1} parent=5 // pred_check_branch
        %1674 = sbr.rel (%p1672) target = $region96
      $region95: #{tpu_custom_call.1} parent=5 // pred_region
        %s1675 = ssub.s32 %s25, 2
        // Predicated region
        $region97: #{tpu_custom_call.1} parent=95 // pred_check
          %p1676 = pneg %p332
        $region98: #{tpu_custom_call.1} parent=95 // pred_check_branch
          %1678 = sbr.rel (%p1676) target = $region100
        $region99: #{tpu_custom_call.1} parent=95 // pred_region
          %s1679 = sand.u32 %s317, 1
          %s1680 = scalar_lea.sflag [#allocation5], %s1679
          %s1681 = sand.u32 %s317, 1
          %s1682 = scalar_lea.vmem [#allocation11], %s1681
          %1683 = dma.done %s1680, 16
        $region100: #{tpu_custom_call.1} parent=95 // pred_fallthru
          _
      $region96: #{tpu_custom_call.1} parent=5 // pred_fallthru
        _
    $region6: #{tpu_custom_call.1} parent=1 // loop_footer
      %s29 = sadd.s32 1, %s25
    $region7: #{tpu_custom_call.1} parent=1 // loop_footer_branch
      %24 = sbr.rel target = $region3
    $region8: #{tpu_custom_call.1} parent=1 // loop_exit
      _
    %1684 = vsyncpa [#allocation4], 1
    %s1685 = scalar_lea.sflag [#allocation4], 1
    %1686 = vsyncpa %s1685, 1
    %1687 = vsyncpa [#allocation7], 1
    %1688 = vsyncpa [#allocation10], 1
    %1689 = vsyncpa [#allocation5], 1
    %s1690 = scalar_lea.sflag [#allocation5], 1
    %1691 = vsyncpa %s1690, 1

</llo_original>
